<compile_context>
chip_gen: v5e
topology: v5e:2x2
jax: 0.10.0
libtpu: 0.0.40
codegen_flags: <defaults>
</compile_context>

<pallas_src>
import math
import functools

import jax
import jax.numpy as jnp
from jax.experimental import pallas as pl
from jax.experimental.pallas import tpu as pltpu


def _round_up(x, m):
    return (x + m - 1) // m * m


def _tlstm_kernel(T_actual, Tc, mask_tail,
                  gx_ref, omf_ref, wd_ref, u_ref,
                  hseq_ref, hT_ref, cT_ref,
                  h_sc, c_sc):
    """One grid step = Tc timesteps of the recurrence for one batch tile.

    gx_ref   : (Tc, Bt, 4*Hp)  precomputed x @ W + bias (gate-blocked, padded)
    omf_ref  : (Tc, Bt, 1)     precomputed 1 - 1/log(e + dt)
    wd_ref   : (Hp, Hp)        zero-padded W_d
    u_ref    : (Hp, 4*Hp)      zero-padded, gate-blocked U
    hseq_ref : (Tc, Bt, Hp)    hidden outputs for this chunk
    hT_ref, cT_ref : (Bt, Hp)  final states (resident output blocks)
    h_sc, c_sc     : (Bt, Hp)  f32 VMEM carry across chunks
    """
    chunk = pl.program_id(1)

    # init_states = None -> zeros at the start of each batch tile's sequence
    @pl.when(chunk == 0)
    def _():
        h_sc[...] = jnp.zeros_like(h_sc)
        c_sc[...] = jnp.zeros_like(c_sc)

    wd = wd_ref[...]
    u = u_ref[...]
    Hp = wd.shape[0]
    t0 = chunk * Tc

    def step(s, carry):
        h, c = carry
        # time-aware cell decomposition:
        #   c_adj = (c - c_s) + c_s/log(e+dt) = c - c_s * (1 - 1/log(e+dt))
        c_s = jnp.tanh(jnp.dot(c, wd, preferred_element_type=jnp.float32))
        c_adj = c - c_s * omf_ref[s]
        # gates: x-projection precomputed outside; only recurrent h @ U here
        gates = gx_ref[s] + jnp.dot(h, u, preferred_element_type=jnp.float32)
        i_t = jax.nn.sigmoid(gates[:, :Hp])
        f_t = jax.nn.sigmoid(gates[:, Hp:2 * Hp])
        g_t = jnp.tanh(gates[:, 2 * Hp:3 * Hp])
        o_t = jax.nn.sigmoid(gates[:, 3 * Hp:])
        c_new = f_t * c_adj + i_t * g_t
        h_new = o_t * jnp.tanh(c_new)
        if mask_tail:  # only emitted when T was padded up to a chunk multiple
            valid = (t0 + s) < T_actual
            h_new = jnp.where(valid, h_new, h)
            c_new = jnp.where(valid, c_new, c)
        hseq_ref[s] = h_new
        return h_new, c_new

    h_fin, c_fin = jax.lax.fori_loop(
        0, Tc, step, (h_sc[...], c_sc[...]), unroll=True)

    h_sc[...] = h_fin
    c_sc[...] = c_fin

    # final states: one store per sequence, not per timestep
    @pl.when(chunk == pl.num_programs(1) - 1)
    def _():
        hT_ref[...] = h_fin
        cT_ref[...] = c_fin


def tlstm_forward(inputs, time_deltas, W_d, W, U, bias,
                  *, chunk_size=16, batch_tile=8):
    """inputs: (B, T, X), time_deltas: (B, T).
    Returns (hidden_seq (B, T, H), (h_T (B, H), c_T (B, H)))."""
    B, T, X = inputs.shape
    H = W_d.shape[0]
    f32 = jnp.float32

    Hp = _round_up(H, 128)                            # lane-aligned hidden dim
    Bt = _round_up(min(batch_tile, max(B, 1)), 8)     # sublane-aligned tile
    Bp = _round_up(B, Bt)
    Tc = max(1, min(chunk_size, T))
    Tp = _round_up(T, Tc)

    x = inputs.astype(f32)

    # ---- hoisted input projection: one big matmul outside the recurrence ----
    gx = jnp.einsum('btx,xg->btg', x, W.astype(f32)) + bias.astype(f32)
    # gate-blocked, lane-aligned layout: gate k -> columns [k*Hp, k*Hp + H)
    gx = gx.reshape(B, T, 4, H)
    gx_p = jnp.zeros((B, T, 4, Hp), f32).at[..., :H].set(gx).reshape(B, T, 4 * Hp)
    gx_tm = jnp.transpose(gx_p, (1, 0, 2))                      # (T, B, 4Hp)
    gx_tm = jnp.pad(gx_tm, ((0, Tp - T), (0, Bp - B), (0, 0)))

    # ---- precomputed decay factor (removes log + divide from serial path) ----
    omf = 1.0 - 1.0 / jnp.log(jnp.float32(math.e) + time_deltas.astype(f32))
    omf_tm = jnp.transpose(omf, (1, 0))[:, :, None]             # (T, B, 1)
    omf_tm = jnp.pad(omf_tm, ((0, Tp - T), (0, Bp - B), (0, 0)))

    # ---- padded recurrent weights (zero rows/cols keep valid outputs exact) ----
    Wd_p = jnp.zeros((Hp, Hp), f32).at[:H, :H].set(W_d.astype(f32))
    U_p = (jnp.zeros((Hp, 4, Hp), f32)
           .at[:H, :, :H].set(U.astype(f32).reshape(H, 4, H))
           .reshape(Hp, 4 * Hp))
    # TODO(synk): for production-sized H, cast Wd_p/U_p (and the dot inputs) to
    # bfloat16 with f32 accumulation and single-buffer them (pl.Buffered(1)) to
    # halve resident VMEM on v7x; kept f32 here for exact parity with the spec.

    nb = Bp // Bt
    nc = Tp // Tc
    mask_tail = Tp != T

    grid_spec = pltpu.PrefetchScalarGridSpec(
        num_scalar_prefetch=0,
        grid=(nb, nc),
        in_specs=[
            pl.BlockSpec((Tc, Bt, 4 * Hp), lambda b, c: (c, b, 0)),  # gates_x
            pl.BlockSpec((Tc, Bt, 1), lambda b, c: (c, b, 0)),       # decay fac
            pl.BlockSpec((Hp, Hp), lambda b, c: (0, 0)),             # W_d
            pl.BlockSpec((Hp, 4 * Hp), lambda b, c: (0, 0)),         # U
        ],
        out_specs=[
            pl.BlockSpec((Tc, Bt, Hp), lambda b, c: (c, b, 0)),      # hidden_seq
            pl.BlockSpec((Bt, Hp), lambda b, c: (b, 0)),             # h_T
            pl.BlockSpec((Bt, Hp), lambda b, c: (b, 0)),             # c_T
        ],
        scratch_shapes=[
            pltpu.VMEM((Bt, Hp), jnp.float32),   # h carry
            pltpu.VMEM((Bt, Hp), jnp.float32),   # c carry
        ],
    )

    out_shapes = (
        jax.ShapeDtypeStruct((Tp, Bp, Hp), jnp.float32),   # hidden_seq (t-major)
        jax.ShapeDtypeStruct((Bp, Hp), jnp.float32),       # h_T
        jax.ShapeDtypeStruct((Bp, Hp), jnp.float32),       # c_T
    )

    hseq_tm, h_T, c_T = pl.pallas_call(
        functools.partial(_tlstm_kernel, T, Tc, mask_tail),
        out_shape=out_shapes,
        grid_spec=grid_spec,
        compiler_params=pltpu.CompilerParams(
            dimension_semantics=("parallel", "arbitrary")),
    )(gx_tm, omf_tm, Wd_p, U_p)

    hidden_seq = jnp.transpose(hseq_tm[:T, :B, :H], (1, 0, 2))   # (B, T, H)
    return hidden_seq, (h_T[:B, :H], c_T[:B, :H])


def tlstm_reference(inputs, time_deltas, W_d, W, U, bias):
    """Pure-JAX reference matching the PyTorch forward."""
    B, T, X = inputs.shape
    H = W_d.shape[0]
    h = jnp.zeros((B, H), jnp.float32)
    c = jnp.zeros((B, H), jnp.float32)
    hs = []
    for t in range(T):
        c_s = jnp.tanh(c @ W_d)
        c_hat_s = c_s * (1.0 / jnp.log(math.e + time_deltas[:, t:t + 1]))
        c_adj = (c - c_s) + c_hat_s
        gates = inputs[:, t, :] @ W + h @ U + bias
        i_t = jax.nn.sigmoid(gates[:, :H])
        f_t = jax.nn.sigmoid(gates[:, H:2 * H])
        g_t = jnp.tanh(gates[:, 2 * H:3 * H])
        o_t = jax.nn.sigmoid(gates[:, 3 * H:])
        c = f_t * c_adj + i_t * g_t
        h = o_t * jnp.tanh(c)
        hs.append(h)
    return jnp.stack(hs, axis=1), (h, c)


if __name__ == "__main__":
    # Small, module-consistent shapes: batch=2, seq=8, input_dim=16, hidden_dim=32
    B, T, X, H = 2, 8, 16, 32
    key = jax.random.PRNGKey(0)
    k_x, k_td, k_wd, k_w, k_u, k_b = jax.random.split(key, 6)

    stdv = 1.0 / math.sqrt(H)   # same init rule as TSLTM.init_weights
    W_d = jax.random.uniform(k_wd, (H, H), jnp.float32, -stdv, stdv)
    W = jax.random.uniform(k_w, (X, 4 * H), jnp.float32, -stdv, stdv)
    U = jax.random.uniform(k_u, (H, 4 * H), jnp.float32, -stdv, stdv)
    bias = jax.random.uniform(k_b, (4 * H,), jnp.float32, -stdv, stdv)

    inputs = jax.random.normal(k_x, (B, T, X), jnp.float32)
    time_deltas = jax.random.uniform(k_td, (B, T), jnp.float32, 0.1, 3.0)

    fwd = jax.jit(tlstm_forward)
    hidden_seq, (h_T, c_T) = jax.block_until_ready(
        fwd(inputs, time_deltas, W_d, W, U, bias))

    ref_seq, (ref_h, ref_c) = tlstm_reference(
        inputs, time_deltas, W_d, W, U, bias)

    assert hidden_seq.shape == (B, T, H)
    assert h_T.shape == (B, H) and c_T.shape == (B, H)
    assert jnp.allclose(hidden_seq, ref_seq, atol=1e-4, rtol=1e-4)
    assert jnp.allclose(h_T, ref_h, atol=1e-4, rtol=1e-4)
    assert jnp.allclose(c_T, ref_c, atol=1e-4, rtol=1e-4)

    print("KERNEL_OK")
</pallas_src>

<mosaic_0001>
module attributes {stable_mosaic.version = 11 : i64} {
  func.func @_tlstm_kernel(%arg0: i32, %arg1: i32, %arg2: memref<8x8x512xf32, #tpu.memory_space<vmem>>, %arg3: memref<8x8x1xf32, #tpu.memory_space<vmem>>, %arg4: memref<128x128xf32, #tpu.memory_space<vmem>>, %arg5: memref<128x512xf32, #tpu.memory_space<vmem>>, %arg6: memref<8x8x128xf32, #tpu.memory_space<vmem>>, %arg7: memref<8x128xf32, #tpu.memory_space<vmem>>, %arg8: memref<8x128xf32, #tpu.memory_space<vmem>>, %arg9: memref<8x128xf32, #tpu.memory_space<vmem>>, %arg10: memref<8x128xf32, #tpu.memory_space<vmem>>) attributes {dimension_semantics = [#tpu.dimension_semantics<parallel>, #tpu.dimension_semantics<arbitrary>], iteration_bounds = array<i64: 1, 1>, scalar_prefetch = 0 : i64, scratch_operands = 2 : i64, tpu.core_type = #tpu.core_type<tc>, window_params = [{transform_indices = @transform_0, window_bounds = array<i64: 8, 8, 512>}, {transform_indices = @transform_1, window_bounds = array<i64: 8, 8, 1>}, {pipeline_mode = #tpu.pipeline_mode<synchronous>, transform_indices = @transform_2, window_bounds = array<i64: 128, 128>}, {pipeline_mode = #tpu.pipeline_mode<synchronous>, transform_indices = @transform_3, window_bounds = array<i64: 128, 512>}, {transform_indices = @transform_4, window_bounds = array<i64: 8, 8, 128>}, {transform_indices = @transform_5, window_bounds = array<i64: 8, 128>}, {transform_indices = @transform_6, window_bounds = array<i64: 8, 128>}]} {
    %c0_i32 = arith.constant 0 : i32
    %0 = arith.cmpi eq, %arg1, %c0_i32 : i32
    %1 = arith.extui %0 : i1 to i32
    %c0_i32_0 = arith.constant 0 : i32
    %2 = arith.cmpi ne, %1, %c0_i32_0 : i32
    scf.if %2 {
      %cst_102 = arith.constant 0.000000e+00 : f32
      %348 = vector.broadcast %cst_102 : f32 to vector<8x128xf32>
      %c0_103 = arith.constant 0 : index
      %c0_104 = arith.constant 0 : index
      %349 = vector.load %arg9[%c0_103, %c0_104] : memref<8x128xf32, #tpu.memory_space<vmem>>, vector<8x128xf32>
      tpu.vector_store %arg9[%c0_103, %c0_104], %348 {strides = array<i32>} : memref<8x128xf32, #tpu.memory_space<vmem>>, vector<8x128xf32>,
      %cst_105 = arith.constant 0.000000e+00 : f32
      %350 = vector.broadcast %cst_105 : f32 to vector<8x128xf32>
      %c0_106 = arith.constant 0 : index
      %c0_107 = arith.constant 0 : index
      %351 = vector.load %arg10[%c0_106, %c0_107] : memref<8x128xf32, #tpu.memory_space<vmem>>, vector<8x128xf32>
      tpu.vector_store %arg10[%c0_106, %c0_107], %350 {strides = array<i32>} : memref<8x128xf32, #tpu.memory_space<vmem>>, vector<8x128xf32>,
    } else {
    }
    %c0 = arith.constant 0 : index
    %c0_1 = arith.constant 0 : index
    %3 = vector.load %arg4[%c0, %c0_1] : memref<128x128xf32, #tpu.memory_space<vmem>>, vector<128x128xf32>
    %c0_2 = arith.constant 0 : index
    %c0_3 = arith.constant 0 : index
    %4 = vector.load %arg5[%c0_2, %c0_3] : memref<128x512xf32, #tpu.memory_space<vmem>>, vector<128x512xf32>
    %c0_4 = arith.constant 0 : index
    %c0_5 = arith.constant 0 : index
    %5 = vector.load %arg9[%c0_4, %c0_5] : memref<8x128xf32, #tpu.memory_space<vmem>>, vector<8x128xf32>
    %c0_6 = arith.constant 0 : index
    %c0_7 = arith.constant 0 : index
    %6 = vector.load %arg10[%c0_6, %c0_7] : memref<8x128xf32, #tpu.memory_space<vmem>>, vector<8x128xf32>
    %c0_i32_8 = arith.constant 0 : i32
    %cst = arith.constant dense<0.000000e+00> : vector<8x128xf32>
    %7 = tpu.matmul %6, %3, %cst {dimension_numbers = #tpu.dot_dimension_numbers<[1], [0], [0], [1], [0, 0, 1, 1], [], []>} : vector<8x128xf32>, vector<128x128xf32>, vector<8x128xf32> -> vector<8x128xf32>
    %8 = math.tanh %7 : vector<8x128xf32>
    %9 = arith.index_cast %c0_i32_8 : i32 to index
    %c0_9 = arith.constant 0 : index
    %c0_10 = arith.constant 0 : index
    %10 = vector.load %arg3[%9, %c0_9, %c0_10] : memref<8x8x1xf32, #tpu.memory_space<vmem>>, vector<1x8x1xf32>
    %11 = vector.shape_cast %10 : vector<1x8x1xf32> to vector<8x1xf32>
    %12 = vector.broadcast %11 : vector<8x1xf32> to vector<8x128xf32>
    %13 = arith.mulf %8, %12 : vector<8x128xf32>
    %14 = arith.subf %6, %13 : vector<8x128xf32>
    %15 = arith.index_cast %c0_i32_8 : i32 to index
    %c0_11 = arith.constant 0 : index
    %c0_12 = arith.constant 0 : index
    %16 = vector.load %arg2[%15, %c0_11, %c0_12] : memref<8x8x512xf32, #tpu.memory_space<vmem>>, vector<1x8x512xf32>
    %17 = vector.shape_cast %16 : vector<1x8x512xf32> to vector<8x512xf32>
    %cst_13 = arith.constant dense<0.000000e+00> : vector<8x512xf32>
    %18 = tpu.matmul %5, %4, %cst_13 {dimension_numbers = #tpu.dot_dimension_numbers<[1], [0], [0], [1], [0, 0, 1, 1], [], []>} : vector<8x128xf32>, vector<128x512xf32>, vector<8x512xf32> -> vector<8x512xf32>
    %19 = arith.addf %17, %18 : vector<8x512xf32>
    %20 = vector.extract_strided_slice %19 {offsets = [0, 0], sizes = [8, 128], strides = [1, 1]} : vector<8x512xf32> to vector<8x128xf32>
    %21 = arith.negf %20 : vector<8x128xf32>
    %22 = math.exp %21 : vector<8x128xf32>
    %cst_14 = arith.constant 1.000000e+00 : f32
    %23 = vector.broadcast %cst_14 : f32 to vector<8x128xf32>
    %24 = arith.addf %23, %22 : vector<8x128xf32>
    %25 = arith.divf %23, %24 : vector<8x128xf32>
    %26 = vector.extract_strided_slice %19 {offsets = [0, 128], sizes = [8, 128], strides = [1, 1]} : vector<8x512xf32> to vector<8x128xf32>
    %27 = arith.negf %26 : vector<8x128xf32>
    %28 = math.exp %27 : vector<8x128xf32>
    %cst_15 = arith.constant 1.000000e+00 : f32
    %29 = vector.broadcast %cst_15 : f32 to vector<8x128xf32>
    %30 = arith.addf %29, %28 : vector<8x128xf32>
    %31 = arith.divf %29, %30 : vector<8x128xf32>
    %32 = vector.extract_strided_slice %19 {offsets = [0, 256], sizes = [8, 128], strides = [1, 1]} : vector<8x512xf32> to vector<8x128xf32>
    %33 = math.tanh %32 : vector<8x128xf32>
    %34 = vector.extract_strided_slice %19 {offsets = [0, 384], sizes = [8, 128], strides = [1, 1]} : vector<8x512xf32> to vector<8x128xf32>
    %35 = arith.negf %34 : vector<8x128xf32>
    %36 = math.exp %35 : vector<8x128xf32>
    %cst_16 = arith.constant 1.000000e+00 : f32
    %37 = vector.broadcast %cst_16 : f32 to vector<8x128xf32>
    %38 = arith.addf %37, %36 : vector<8x128xf32>
    %39 = arith.divf %37, %38 : vector<8x128xf32>
    %40 = arith.mulf %31, %14 : vector<8x128xf32>
    %41 = arith.mulf %25, %33 : vector<8x128xf32>
    %42 = arith.addf %40, %41 : vector<8x128xf32>
    %43 = math.tanh %42 : vector<8x128xf32>
    %44 = arith.mulf %39, %43 : vector<8x128xf32>
    %45 = arith.index_cast %c0_i32_8 : i32 to index
    %c0_17 = arith.constant 0 : index
    %c0_18 = arith.constant 0 : index
    %46 = vector.load %arg6[%45, %c0_17, %c0_18] : memref<8x8x128xf32, #tpu.memory_space<vmem>>, vector<1x8x128xf32>
    %47 = vector.shape_cast %46 : vector<1x8x128xf32> to vector<8x128xf32>
    %48 = vector.shape_cast %44 : vector<8x128xf32> to vector<1x8x128xf32>
    tpu.vector_store %arg6[%45, %c0_17, %c0_18], %48 {strides = array<i32>} : memref<8x8x128xf32, #tpu.memory_space<vmem>>, vector<1x8x128xf32>,
    %c1_i32 = arith.constant 1 : i32
    %cst_19 = arith.constant dense<0.000000e+00> : vector<8x128xf32>
    %49 = tpu.matmul %42, %3, %cst_19 {dimension_numbers = #tpu.dot_dimension_numbers<[1], [0], [0], [1], [0, 0, 1, 1], [], []>} : vector<8x128xf32>, vector<128x128xf32>, vector<8x128xf32> -> vector<8x128xf32>
    %50 = math.tanh %49 : vector<8x128xf32>
    %51 = arith.index_cast %c1_i32 : i32 to index
    %c0_20 = arith.constant 0 : index
    %c0_21 = arith.constant 0 : index
    %52 = vector.load %arg3[%51, %c0_20, %c0_21] : memref<8x8x1xf32, #tpu.memory_space<vmem>>, vector<1x8x1xf32>
    %53 = vector.shape_cast %52 : vector<1x8x1xf32> to vector<8x1xf32>
    %54 = vector.broadcast %53 : vector<8x1xf32> to vector<8x128xf32>
    %55 = arith.mulf %50, %54 : vector<8x128xf32>
    %56 = arith.subf %42, %55 : vector<8x128xf32>
    %57 = arith.index_cast %c1_i32 : i32 to index
    %c0_22 = arith.constant 0 : index
    %c0_23 = arith.constant 0 : index
    %58 = vector.load %arg2[%57, %c0_22, %c0_23] : memref<8x8x512xf32, #tpu.memory_space<vmem>>, vector<1x8x512xf32>
    %59 = vector.shape_cast %58 : vector<1x8x512xf32> to vector<8x512xf32>
    %cst_24 = arith.constant dense<0.000000e+00> : vector<8x512xf32>
    %60 = tpu.matmul %44, %4, %cst_24 {dimension_numbers = #tpu.dot_dimension_numbers<[1], [0], [0], [1], [0, 0, 1, 1], [], []>} : vector<8x128xf32>, vector<128x512xf32>, vector<8x512xf32> -> vector<8x512xf32>
    %61 = arith.addf %59, %60 : vector<8x512xf32>
    %62 = vector.extract_strided_slice %61 {offsets = [0, 0], sizes = [8, 128], strides = [1, 1]} : vector<8x512xf32> to vector<8x128xf32>
    %63 = arith.negf %62 : vector<8x128xf32>
    %64 = math.exp %63 : vector<8x128xf32>
    %cst_25 = arith.constant 1.000000e+00 : f32
    %65 = vector.broadcast %cst_25 : f32 to vector<8x128xf32>
    %66 = arith.addf %65, %64 : vector<8x128xf32>
    %67 = arith.divf %65, %66 : vector<8x128xf32>
    %68 = vector.extract_strided_slice %61 {offsets = [0, 128], sizes = [8, 128], strides = [1, 1]} : vector<8x512xf32> to vector<8x128xf32>
    %69 = arith.negf %68 : vector<8x128xf32>
    %70 = math.exp %69 : vector<8x128xf32>
    %cst_26 = arith.constant 1.000000e+00 : f32
    %71 = vector.broadcast %cst_26 : f32 to vector<8x128xf32>
    %72 = arith.addf %71, %70 : vector<8x128xf32>
    %73 = arith.divf %71, %72 : vector<8x128xf32>
    %74 = vector.extract_strided_slice %61 {offsets = [0, 256], sizes = [8, 128], strides = [1, 1]} : vector<8x512xf32> to vector<8x128xf32>
    %75 = math.tanh %74 : vector<8x128xf32>
    %76 = vector.extract_strided_slice %61 {offsets = [0, 384], sizes = [8, 128], strides = [1, 1]} : vector<8x512xf32> to vector<8x128xf32>
    %77 = arith.negf %76 : vector<8x128xf32>
    %78 = math.exp %77 : vector<8x128xf32>
    %cst_27 = arith.constant 1.000000e+00 : f32
    %79 = vector.broadcast %cst_27 : f32 to vector<8x128xf32>
    %80 = arith.addf %79, %78 : vector<8x128xf32>
    %81 = arith.divf %79, %80 : vector<8x128xf32>
    %82 = arith.mulf %73, %56 : vector<8x128xf32>
    %83 = arith.mulf %67, %75 : vector<8x128xf32>
    %84 = arith.addf %82, %83 : vector<8x128xf32>
    %85 = math.tanh %84 : vector<8x128xf32>
    %86 = arith.mulf %81, %85 : vector<8x128xf32>
    %87 = arith.index_cast %c1_i32 : i32 to index
    %c0_28 = arith.constant 0 : index
    %c0_29 = arith.constant 0 : index
    %88 = vector.load %arg6[%87, %c0_28, %c0_29] : memref<8x8x128xf32, #tpu.memory_space<vmem>>, vector<1x8x128xf32>
    %89 = vector.shape_cast %88 : vector<1x8x128xf32> to vector<8x128xf32>
    %90 = vector.shape_cast %86 : vector<8x128xf32> to vector<1x8x128xf32>
    tpu.vector_store %arg6[%87, %c0_28, %c0_29], %90 {strides = array<i32>} : memref<8x8x128xf32, #tpu.memory_space<vmem>>, vector<1x8x128xf32>,
    %c2_i32 = arith.constant 2 : i32
    %cst_30 = arith.constant dense<0.000000e+00> : vector<8x128xf32>
    %91 = tpu.matmul %84, %3, %cst_30 {dimension_numbers = #tpu.dot_dimension_numbers<[1], [0], [0], [1], [0, 0, 1, 1], [], []>} : vector<8x128xf32>, vector<128x128xf32>, vector<8x128xf32> -> vector<8x128xf32>
    %92 = math.tanh %91 : vector<8x128xf32>
    %93 = arith.index_cast %c2_i32 : i32 to index
    %c0_31 = arith.constant 0 : index
    %c0_32 = arith.constant 0 : index
    %94 = vector.load %arg3[%93, %c0_31, %c0_32] : memref<8x8x1xf32, #tpu.memory_space<vmem>>, vector<1x8x1xf32>
    %95 = vector.shape_cast %94 : vector<1x8x1xf32> to vector<8x1xf32>
    %96 = vector.broadcast %95 : vector<8x1xf32> to vector<8x128xf32>
    %97 = arith.mulf %92, %96 : vector<8x128xf32>
    %98 = arith.subf %84, %97 : vector<8x128xf32>
    %99 = arith.index_cast %c2_i32 : i32 to index
    %c0_33 = arith.constant 0 : index
    %c0_34 = arith.constant 0 : index
    %100 = vector.load %arg2[%99, %c0_33, %c0_34] : memref<8x8x512xf32, #tpu.memory_space<vmem>>, vector<1x8x512xf32>
    %101 = vector.shape_cast %100 : vector<1x8x512xf32> to vector<8x512xf32>
    %cst_35 = arith.constant dense<0.000000e+00> : vector<8x512xf32>
    %102 = tpu.matmul %86, %4, %cst_35 {dimension_numbers = #tpu.dot_dimension_numbers<[1], [0], [0], [1], [0, 0, 1, 1], [], []>} : vector<8x128xf32>, vector<128x512xf32>, vector<8x512xf32> -> vector<8x512xf32>
    %103 = arith.addf %101, %102 : vector<8x512xf32>
    %104 = vector.extract_strided_slice %103 {offsets = [0, 0], sizes = [8, 128], strides = [1, 1]} : vector<8x512xf32> to vector<8x128xf32>
    %105 = arith.negf %104 : vector<8x128xf32>
    %106 = math.exp %105 : vector<8x128xf32>
    %cst_36 = arith.constant 1.000000e+00 : f32
    %107 = vector.broadcast %cst_36 : f32 to vector<8x128xf32>
    %108 = arith.addf %107, %106 : vector<8x128xf32>
    %109 = arith.divf %107, %108 : vector<8x128xf32>
    %110 = vector.extract_strided_slice %103 {offsets = [0, 128], sizes = [8, 128], strides = [1, 1]} : vector<8x512xf32> to vector<8x128xf32>
    %111 = arith.negf %110 : vector<8x128xf32>
    %112 = math.exp %111 : vector<8x128xf32>
    %cst_37 = arith.constant 1.000000e+00 : f32
    %113 = vector.broadcast %cst_37 : f32 to vector<8x128xf32>
    %114 = arith.addf %113, %112 : vector<8x128xf32>
    %115 = arith.divf %113, %114 : vector<8x128xf32>
    %116 = vector.extract_strided_slice %103 {offsets = [0, 256], sizes = [8, 128], strides = [1, 1]} : vector<8x512xf32> to vector<8x128xf32>
    %117 = math.tanh %116 : vector<8x128xf32>
    %118 = vector.extract_strided_slice %103 {offsets = [0, 384], sizes = [8, 128], strides = [1, 1]} : vector<8x512xf32> to vector<8x128xf32>
    %119 = arith.negf %118 : vector<8x128xf32>
    %120 = math.exp %119 : vector<8x128xf32>
    %cst_38 = arith.constant 1.000000e+00 : f32
    %121 = vector.broadcast %cst_38 : f32 to vector<8x128xf32>
    %122 = arith.addf %121, %120 : vector<8x128xf32>
    %123 = arith.divf %121, %122 : vector<8x128xf32>
    %124 = arith.mulf %115, %98 : vector<8x128xf32>
    %125 = arith.mulf %109, %117 : vector<8x128xf32>
    %126 = arith.addf %124, %125 : vector<8x128xf32>
    %127 = math.tanh %126 : vector<8x128xf32>
    %128 = arith.mulf %123, %127 : vector<8x128xf32>
    %129 = arith.index_cast %c2_i32 : i32 to index
    %c0_39 = arith.constant 0 : index
    %c0_40 = arith.constant 0 : index
    %130 = vector.load %arg6[%129, %c0_39, %c0_40] : memref<8x8x128xf32, #tpu.memory_space<vmem>>, vector<1x8x128xf32>
    %131 = vector.shape_cast %130 : vector<1x8x128xf32> to vector<8x128xf32>
    %132 = vector.shape_cast %128 : vector<8x128xf32> to vector<1x8x128xf32>
    tpu.vector_store %arg6[%129, %c0_39, %c0_40], %132 {strides = array<i32>} : memref<8x8x128xf32, #tpu.memory_space<vmem>>, vector<1x8x128xf32>,
    %c3_i32 = arith.constant 3 : i32
    %cst_41 = arith.constant dense<0.000000e+00> : vector<8x128xf32>
    %133 = tpu.matmul %126, %3, %cst_41 {dimension_numbers = #tpu.dot_dimension_numbers<[1], [0], [0], [1], [0, 0, 1, 1], [], []>} : vector<8x128xf32>, vector<128x128xf32>, vector<8x128xf32> -> vector<8x128xf32>
    %134 = math.tanh %133 : vector<8x128xf32>
    %135 = arith.index_cast %c3_i32 : i32 to index
    %c0_42 = arith.constant 0 : index
    %c0_43 = arith.constant 0 : index
    %136 = vector.load %arg3[%135, %c0_42, %c0_43] : memref<8x8x1xf32, #tpu.memory_space<vmem>>, vector<1x8x1xf32>
    %137 = vector.shape_cast %136 : vector<1x8x1xf32> to vector<8x1xf32>
    %138 = vector.broadcast %137 : vector<8x1xf32> to vector<8x128xf32>
    %139 = arith.mulf %134, %138 : vector<8x128xf32>
    %140 = arith.subf %126, %139 : vector<8x128xf32>
    %141 = arith.index_cast %c3_i32 : i32 to index
    %c0_44 = arith.constant 0 : index
    %c0_45 = arith.constant 0 : index
    %142 = vector.load %arg2[%141, %c0_44, %c0_45] : memref<8x8x512xf32, #tpu.memory_space<vmem>>, vector<1x8x512xf32>
    %143 = vector.shape_cast %142 : vector<1x8x512xf32> to vector<8x512xf32>
    %cst_46 = arith.constant dense<0.000000e+00> : vector<8x512xf32>
    %144 = tpu.matmul %128, %4, %cst_46 {dimension_numbers = #tpu.dot_dimension_numbers<[1], [0], [0], [1], [0, 0, 1, 1], [], []>} : vector<8x128xf32>, vector<128x512xf32>, vector<8x512xf32> -> vector<8x512xf32>
    %145 = arith.addf %143, %144 : vector<8x512xf32>
    %146 = vector.extract_strided_slice %145 {offsets = [0, 0], sizes = [8, 128], strides = [1, 1]} : vector<8x512xf32> to vector<8x128xf32>
    %147 = arith.negf %146 : vector<8x128xf32>
    %148 = math.exp %147 : vector<8x128xf32>
    %cst_47 = arith.constant 1.000000e+00 : f32
    %149 = vector.broadcast %cst_47 : f32 to vector<8x128xf32>
    %150 = arith.addf %149, %148 : vector<8x128xf32>
    %151 = arith.divf %149, %150 : vector<8x128xf32>
    %152 = vector.extract_strided_slice %145 {offsets = [0, 128], sizes = [8, 128], strides = [1, 1]} : vector<8x512xf32> to vector<8x128xf32>
    %153 = arith.negf %152 : vector<8x128xf32>
    %154 = math.exp %153 : vector<8x128xf32>
    %cst_48 = arith.constant 1.000000e+00 : f32
    %155 = vector.broadcast %cst_48 : f32 to vector<8x128xf32>
    %156 = arith.addf %155, %154 : vector<8x128xf32>
    %157 = arith.divf %155, %156 : vector<8x128xf32>
    %158 = vector.extract_strided_slice %145 {offsets = [0, 256], sizes = [8, 128], strides = [1, 1]} : vector<8x512xf32> to vector<8x128xf32>
    %159 = math.tanh %158 : vector<8x128xf32>
    %160 = vector.extract_strided_slice %145 {offsets = [0, 384], sizes = [8, 128], strides = [1, 1]} : vector<8x512xf32> to vector<8x128xf32>
    %161 = arith.negf %160 : vector<8x128xf32>
    %162 = math.exp %161 : vector<8x128xf32>
    %cst_49 = arith.constant 1.000000e+00 : f32
    %163 = vector.broadcast %cst_49 : f32 to vector<8x128xf32>
    %164 = arith.addf %163, %162 : vector<8x128xf32>
    %165 = arith.divf %163, %164 : vector<8x128xf32>
    %166 = arith.mulf %157, %140 : vector<8x128xf32>
    %167 = arith.mulf %151, %159 : vector<8x128xf32>
    %168 = arith.addf %166, %167 : vector<8x128xf32>
    %169 = math.tanh %168 : vector<8x128xf32>
    %170 = arith.mulf %165, %169 : vector<8x128xf32>
    %171 = arith.index_cast %c3_i32 : i32 to index
    %c0_50 = arith.constant 0 : index
    %c0_51 = arith.constant 0 : index
    %172 = vector.load %arg6[%171, %c0_50, %c0_51] : memref<8x8x128xf32, #tpu.memory_space<vmem>>, vector<1x8x128xf32>
    %173 = vector.shape_cast %172 : vector<1x8x128xf32> to vector<8x128xf32>
    %174 = vector.shape_cast %170 : vector<8x128xf32> to vector<1x8x128xf32>
    tpu.vector_store %arg6[%171, %c0_50, %c0_51], %174 {strides = array<i32>} : memref<8x8x128xf32, #tpu.memory_space<vmem>>, vector<1x8x128xf32>,
    %c4_i32 = arith.constant 4 : i32
    %cst_52 = arith.constant dense<0.000000e+00> : vector<8x128xf32>
    %175 = tpu.matmul %168, %3, %cst_52 {dimension_numbers = #tpu.dot_dimension_numbers<[1], [0], [0], [1], [0, 0, 1, 1], [], []>} : vector<8x128xf32>, vector<128x128xf32>, vector<8x128xf32> -> vector<8x128xf32>
    %176 = math.tanh %175 : vector<8x128xf32>
    %177 = arith.index_cast %c4_i32 : i32 to index
    %c0_53 = arith.constant 0 : index
    %c0_54 = arith.constant 0 : index
    %178 = vector.load %arg3[%177, %c0_53, %c0_54] : memref<8x8x1xf32, #tpu.memory_space<vmem>>, vector<1x8x1xf32>
    %179 = vector.shape_cast %178 : vector<1x8x1xf32> to vector<8x1xf32>
    %180 = vector.broadcast %179 : vector<8x1xf32> to vector<8x128xf32>
    %181 = arith.mulf %176, %180 : vector<8x128xf32>
    %182 = arith.subf %168, %181 : vector<8x128xf32>
    %183 = arith.index_cast %c4_i32 : i32 to index
    %c0_55 = arith.constant 0 : index
    %c0_56 = arith.constant 0 : index
    %184 = vector.load %arg2[%183, %c0_55, %c0_56] : memref<8x8x512xf32, #tpu.memory_space<vmem>>, vector<1x8x512xf32>
    %185 = vector.shape_cast %184 : vector<1x8x512xf32> to vector<8x512xf32>
    %cst_57 = arith.constant dense<0.000000e+00> : vector<8x512xf32>
    %186 = tpu.matmul %170, %4, %cst_57 {dimension_numbers = #tpu.dot_dimension_numbers<[1], [0], [0], [1], [0, 0, 1, 1], [], []>} : vector<8x128xf32>, vector<128x512xf32>, vector<8x512xf32> -> vector<8x512xf32>
    %187 = arith.addf %185, %186 : vector<8x512xf32>
    %188 = vector.extract_strided_slice %187 {offsets = [0, 0], sizes = [8, 128], strides = [1, 1]} : vector<8x512xf32> to vector<8x128xf32>
    %189 = arith.negf %188 : vector<8x128xf32>
    %190 = math.exp %189 : vector<8x128xf32>
    %cst_58 = arith.constant 1.000000e+00 : f32
    %191 = vector.broadcast %cst_58 : f32 to vector<8x128xf32>
    %192 = arith.addf %191, %190 : vector<8x128xf32>
    %193 = arith.divf %191, %192 : vector<8x128xf32>
    %194 = vector.extract_strided_slice %187 {offsets = [0, 128], sizes = [8, 128], strides = [1, 1]} : vector<8x512xf32> to vector<8x128xf32>
    %195 = arith.negf %194 : vector<8x128xf32>
    %196 = math.exp %195 : vector<8x128xf32>
    %cst_59 = arith.constant 1.000000e+00 : f32
    %197 = vector.broadcast %cst_59 : f32 to vector<8x128xf32>
    %198 = arith.addf %197, %196 : vector<8x128xf32>
    %199 = arith.divf %197, %198 : vector<8x128xf32>
    %200 = vector.extract_strided_slice %187 {offsets = [0, 256], sizes = [8, 128], strides = [1, 1]} : vector<8x512xf32> to vector<8x128xf32>
    %201 = math.tanh %200 : vector<8x128xf32>
    %202 = vector.extract_strided_slice %187 {offsets = [0, 384], sizes = [8, 128], strides = [1, 1]} : vector<8x512xf32> to vector<8x128xf32>
    %203 = arith.negf %202 : vector<8x128xf32>
    %204 = math.exp %203 : vector<8x128xf32>
    %cst_60 = arith.constant 1.000000e+00 : f32
    %205 = vector.broadcast %cst_60 : f32 to vector<8x128xf32>
    %206 = arith.addf %205, %204 : vector<8x128xf32>
    %207 = arith.divf %205, %206 : vector<8x128xf32>
    %208 = arith.mulf %199, %182 : vector<8x128xf32>
    %209 = arith.mulf %193, %201 : vector<8x128xf32>
    %210 = arith.addf %208, %209 : vector<8x128xf32>
    %211 = math.tanh %210 : vector<8x128xf32>
    %212 = arith.mulf %207, %211 : vector<8x128xf32>
    %213 = arith.index_cast %c4_i32 : i32 to index
    %c0_61 = arith.constant 0 : index
    %c0_62 = arith.constant 0 : index
    %214 = vector.load %arg6[%213, %c0_61, %c0_62] : memref<8x8x128xf32, #tpu.memory_space<vmem>>, vector<1x8x128xf32>
    %215 = vector.shape_cast %214 : vector<1x8x128xf32> to vector<8x128xf32>
    %216 = vector.shape_cast %212 : vector<8x128xf32> to vector<1x8x128xf32>
    tpu.vector_store %arg6[%213, %c0_61, %c0_62], %216 {strides = array<i32>} : memref<8x8x128xf32, #tpu.memory_space<vmem>>, vector<1x8x128xf32>,
    %c5_i32 = arith.constant 5 : i32
    %cst_63 = arith.constant dense<0.000000e+00> : vector<8x128xf32>
    %217 = tpu.matmul %210, %3, %cst_63 {dimension_numbers = #tpu.dot_dimension_numbers<[1], [0], [0], [1], [0, 0, 1, 1], [], []>} : vector<8x128xf32>, vector<128x128xf32>, vector<8x128xf32> -> vector<8x128xf32>
    %218 = math.tanh %217 : vector<8x128xf32>
    %219 = arith.index_cast %c5_i32 : i32 to index
    %c0_64 = arith.constant 0 : index
    %c0_65 = arith.constant 0 : index
    %220 = vector.load %arg3[%219, %c0_64, %c0_65] : memref<8x8x1xf32, #tpu.memory_space<vmem>>, vector<1x8x1xf32>
    %221 = vector.shape_cast %220 : vector<1x8x1xf32> to vector<8x1xf32>
    %222 = vector.broadcast %221 : vector<8x1xf32> to vector<8x128xf32>
    %223 = arith.mulf %218, %222 : vector<8x128xf32>
    %224 = arith.subf %210, %223 : vector<8x128xf32>
    %225 = arith.index_cast %c5_i32 : i32 to index
    %c0_66 = arith.constant 0 : index
    %c0_67 = arith.constant 0 : index
    %226 = vector.load %arg2[%225, %c0_66, %c0_67] : memref<8x8x512xf32, #tpu.memory_space<vmem>>, vector<1x8x512xf32>
    %227 = vector.shape_cast %226 : vector<1x8x512xf32> to vector<8x512xf32>
    %cst_68 = arith.constant dense<0.000000e+00> : vector<8x512xf32>
    %228 = tpu.matmul %212, %4, %cst_68 {dimension_numbers = #tpu.dot_dimension_numbers<[1], [0], [0], [1], [0, 0, 1, 1], [], []>} : vector<8x128xf32>, vector<128x512xf32>, vector<8x512xf32> -> vector<8x512xf32>
    %229 = arith.addf %227, %228 : vector<8x512xf32>
    %230 = vector.extract_strided_slice %229 {offsets = [0, 0], sizes = [8, 128], strides = [1, 1]} : vector<8x512xf32> to vector<8x128xf32>
    %231 = arith.negf %230 : vector<8x128xf32>
    %232 = math.exp %231 : vector<8x128xf32>
    %cst_69 = arith.constant 1.000000e+00 : f32
    %233 = vector.broadcast %cst_69 : f32 to vector<8x128xf32>
    %234 = arith.addf %233, %232 : vector<8x128xf32>
    %235 = arith.divf %233, %234 : vector<8x128xf32>
    %236 = vector.extract_strided_slice %229 {offsets = [0, 128], sizes = [8, 128], strides = [1, 1]} : vector<8x512xf32> to vector<8x128xf32>
    %237 = arith.negf %236 : vector<8x128xf32>
    %238 = math.exp %237 : vector<8x128xf32>
    %cst_70 = arith.constant 1.000000e+00 : f32
    %239 = vector.broadcast %cst_70 : f32 to vector<8x128xf32>
    %240 = arith.addf %239, %238 : vector<8x128xf32>
    %241 = arith.divf %239, %240 : vector<8x128xf32>
    %242 = vector.extract_strided_slice %229 {offsets = [0, 256], sizes = [8, 128], strides = [1, 1]} : vector<8x512xf32> to vector<8x128xf32>
    %243 = math.tanh %242 : vector<8x128xf32>
    %244 = vector.extract_strided_slice %229 {offsets = [0, 384], sizes = [8, 128], strides = [1, 1]} : vector<8x512xf32> to vector<8x128xf32>
    %245 = arith.negf %244 : vector<8x128xf32>
    %246 = math.exp %245 : vector<8x128xf32>
    %cst_71 = arith.constant 1.000000e+00 : f32
    %247 = vector.broadcast %cst_71 : f32 to vector<8x128xf32>
    %248 = arith.addf %247, %246 : vector<8x128xf32>
    %249 = arith.divf %247, %248 : vector<8x128xf32>
    %250 = arith.mulf %241, %224 : vector<8x128xf32>
    %251 = arith.mulf %235, %243 : vector<8x128xf32>
    %252 = arith.addf %250, %251 : vector<8x128xf32>
    %253 = math.tanh %252 : vector<8x128xf32>
    %254 = arith.mulf %249, %253 : vector<8x128xf32>
    %255 = arith.index_cast %c5_i32 : i32 to index
    %c0_72 = arith.constant 0 : index
    %c0_73 = arith.constant 0 : index
    %256 = vector.load %arg6[%255, %c0_72, %c0_73] : memref<8x8x128xf32, #tpu.memory_space<vmem>>, vector<1x8x128xf32>
    %257 = vector.shape_cast %256 : vector<1x8x128xf32> to vector<8x128xf32>
    %258 = vector.shape_cast %254 : vector<8x128xf32> to vector<1x8x128xf32>
    tpu.vector_store %arg6[%255, %c0_72, %c0_73], %258 {strides = array<i32>} : memref<8x8x128xf32, #tpu.memory_space<vmem>>, vector<1x8x128xf32>,
    %c6_i32 = arith.constant 6 : i32
    %cst_74 = arith.constant dense<0.000000e+00> : vector<8x128xf32>
    %259 = tpu.matmul %252, %3, %cst_74 {dimension_numbers = #tpu.dot_dimension_numbers<[1], [0], [0], [1], [0, 0, 1, 1], [], []>} : vector<8x128xf32>, vector<128x128xf32>, vector<8x128xf32> -> vector<8x128xf32>
    %260 = math.tanh %259 : vector<8x128xf32>
    %261 = arith.index_cast %c6_i32 : i32 to index
    %c0_75 = arith.constant 0 : index
    %c0_76 = arith.constant 0 : index
    %262 = vector.load %arg3[%261, %c0_75, %c0_76] : memref<8x8x1xf32, #tpu.memory_space<vmem>>, vector<1x8x1xf32>
    %263 = vector.shape_cast %262 : vector<1x8x1xf32> to vector<8x1xf32>
    %264 = vector.broadcast %263 : vector<8x1xf32> to vector<8x128xf32>
    %265 = arith.mulf %260, %264 : vector<8x128xf32>
    %266 = arith.subf %252, %265 : vector<8x128xf32>
    %267 = arith.index_cast %c6_i32 : i32 to index
    %c0_77 = arith.constant 0 : index
    %c0_78 = arith.constant 0 : index
    %268 = vector.load %arg2[%267, %c0_77, %c0_78] : memref<8x8x512xf32, #tpu.memory_space<vmem>>, vector<1x8x512xf32>
    %269 = vector.shape_cast %268 : vector<1x8x512xf32> to vector<8x512xf32>
    %cst_79 = arith.constant dense<0.000000e+00> : vector<8x512xf32>
    %270 = tpu.matmul %254, %4, %cst_79 {dimension_numbers = #tpu.dot_dimension_numbers<[1], [0], [0], [1], [0, 0, 1, 1], [], []>} : vector<8x128xf32>, vector<128x512xf32>, vector<8x512xf32> -> vector<8x512xf32>
    %271 = arith.addf %269, %270 : vector<8x512xf32>
    %272 = vector.extract_strided_slice %271 {offsets = [0, 0], sizes = [8, 128], strides = [1, 1]} : vector<8x512xf32> to vector<8x128xf32>
    %273 = arith.negf %272 : vector<8x128xf32>
    %274 = math.exp %273 : vector<8x128xf32>
    %cst_80 = arith.constant 1.000000e+00 : f32
    %275 = vector.broadcast %cst_80 : f32 to vector<8x128xf32>
    %276 = arith.addf %275, %274 : vector<8x128xf32>
    %277 = arith.divf %275, %276 : vector<8x128xf32>
    %278 = vector.extract_strided_slice %271 {offsets = [0, 128], sizes = [8, 128], strides = [1, 1]} : vector<8x512xf32> to vector<8x128xf32>
    %279 = arith.negf %278 : vector<8x128xf32>
    %280 = math.exp %279 : vector<8x128xf32>
    %cst_81 = arith.constant 1.000000e+00 : f32
    %281 = vector.broadcast %cst_81 : f32 to vector<8x128xf32>
    %282 = arith.addf %281, %280 : vector<8x128xf32>
    %283 = arith.divf %281, %282 : vector<8x128xf32>
    %284 = vector.extract_strided_slice %271 {offsets = [0, 256], sizes = [8, 128], strides = [1, 1]} : vector<8x512xf32> to vector<8x128xf32>
    %285 = math.tanh %284 : vector<8x128xf32>
    %286 = vector.extract_strided_slice %271 {offsets = [0, 384], sizes = [8, 128], strides = [1, 1]} : vector<8x512xf32> to vector<8x128xf32>
    %287 = arith.negf %286 : vector<8x128xf32>
    %288 = math.exp %287 : vector<8x128xf32>
    %cst_82 = arith.constant 1.000000e+00 : f32
    %289 = vector.broadcast %cst_82 : f32 to vector<8x128xf32>
    %290 = arith.addf %289, %288 : vector<8x128xf32>
    %291 = arith.divf %289, %290 : vector<8x128xf32>
    %292 = arith.mulf %283, %266 : vector<8x128xf32>
    %293 = arith.mulf %277, %285 : vector<8x128xf32>
    %294 = arith.addf %292, %293 : vector<8x128xf32>
    %295 = math.tanh %294 : vector<8x128xf32>
    %296 = arith.mulf %291, %295 : vector<8x128xf32>
    %297 = arith.index_cast %c6_i32 : i32 to index
    %c0_83 = arith.constant 0 : index
    %c0_84 = arith.constant 0 : index
    %298 = vector.load %arg6[%297, %c0_83, %c0_84] : memref<8x8x128xf32, #tpu.memory_space<vmem>>, vector<1x8x128xf32>
    %299 = vector.shape_cast %298 : vector<1x8x128xf32> to vector<8x128xf32>
    %300 = vector.shape_cast %296 : vector<8x128xf32> to vector<1x8x128xf32>
    tpu.vector_store %arg6[%297, %c0_83, %c0_84], %300 {strides = array<i32>} : memref<8x8x128xf32, #tpu.memory_space<vmem>>, vector<1x8x128xf32>,
    %c7_i32 = arith.constant 7 : i32
    %cst_85 = arith.constant dense<0.000000e+00> : vector<8x128xf32>
    %301 = tpu.matmul %294, %3, %cst_85 {dimension_numbers = #tpu.dot_dimension_numbers<[1], [0], [0], [1], [0, 0, 1, 1], [], []>} : vector<8x128xf32>, vector<128x128xf32>, vector<8x128xf32> -> vector<8x128xf32>
    %302 = math.tanh %301 : vector<8x128xf32>
    %303 = arith.index_cast %c7_i32 : i32 to index
    %c0_86 = arith.constant 0 : index
    %c0_87 = arith.constant 0 : index
    %304 = vector.load %arg3[%303, %c0_86, %c0_87] : memref<8x8x1xf32, #tpu.memory_space<vmem>>, vector<1x8x1xf32>
    %305 = vector.shape_cast %304 : vector<1x8x1xf32> to vector<8x1xf32>
    %306 = vector.broadcast %305 : vector<8x1xf32> to vector<8x128xf32>
    %307 = arith.mulf %302, %306 : vector<8x128xf32>
    %308 = arith.subf %294, %307 : vector<8x128xf32>
    %309 = arith.index_cast %c7_i32 : i32 to index
    %c0_88 = arith.constant 0 : index
    %c0_89 = arith.constant 0 : index
    %310 = vector.load %arg2[%309, %c0_88, %c0_89] : memref<8x8x512xf32, #tpu.memory_space<vmem>>, vector<1x8x512xf32>
    %311 = vector.shape_cast %310 : vector<1x8x512xf32> to vector<8x512xf32>
    %cst_90 = arith.constant dense<0.000000e+00> : vector<8x512xf32>
    %312 = tpu.matmul %296, %4, %cst_90 {dimension_numbers = #tpu.dot_dimension_numbers<[1], [0], [0], [1], [0, 0, 1, 1], [], []>} : vector<8x128xf32>, vector<128x512xf32>, vector<8x512xf32> -> vector<8x512xf32>
    %313 = arith.addf %311, %312 : vector<8x512xf32>
    %314 = vector.extract_strided_slice %313 {offsets = [0, 0], sizes = [8, 128], strides = [1, 1]} : vector<8x512xf32> to vector<8x128xf32>
    %315 = arith.negf %314 : vector<8x128xf32>
    %316 = math.exp %315 : vector<8x128xf32>
    %cst_91 = arith.constant 1.000000e+00 : f32
    %317 = vector.broadcast %cst_91 : f32 to vector<8x128xf32>
    %318 = arith.addf %317, %316 : vector<8x128xf32>
    %319 = arith.divf %317, %318 : vector<8x128xf32>
    %320 = vector.extract_strided_slice %313 {offsets = [0, 128], sizes = [8, 128], strides = [1, 1]} : vector<8x512xf32> to vector<8x128xf32>
    %321 = arith.negf %320 : vector<8x128xf32>
    %322 = math.exp %321 : vector<8x128xf32>
    %cst_92 = arith.constant 1.000000e+00 : f32
    %323 = vector.broadcast %cst_92 : f32 to vector<8x128xf32>
    %324 = arith.addf %323, %322 : vector<8x128xf32>
    %325 = arith.divf %323, %324 : vector<8x128xf32>
    %326 = vector.extract_strided_slice %313 {offsets = [0, 256], sizes = [8, 128], strides = [1, 1]} : vector<8x512xf32> to vector<8x128xf32>
    %327 = math.tanh %326 : vector<8x128xf32>
    %328 = vector.extract_strided_slice %313 {offsets = [0, 384], sizes = [8, 128], strides = [1, 1]} : vector<8x512xf32> to vector<8x128xf32>
    %329 = arith.negf %328 : vector<8x128xf32>
    %330 = math.exp %329 : vector<8x128xf32>
    %cst_93 = arith.constant 1.000000e+00 : f32
    %331 = vector.broadcast %cst_93 : f32 to vector<8x128xf32>
    %332 = arith.addf %331, %330 : vector<8x128xf32>
    %333 = arith.divf %331, %332 : vector<8x128xf32>
    %334 = arith.mulf %325, %308 : vector<8x128xf32>
    %335 = arith.mulf %319, %327 : vector<8x128xf32>
    %336 = arith.addf %334, %335 : vector<8x128xf32>
    %337 = math.tanh %336 : vector<8x128xf32>
    %338 = arith.mulf %333, %337 : vector<8x128xf32>
    %339 = arith.index_cast %c7_i32 : i32 to index
    %c0_94 = arith.constant 0 : index
    %c0_95 = arith.constant 0 : index
    %340 = vector.load %arg6[%339, %c0_94, %c0_95] : memref<8x8x128xf32, #tpu.memory_space<vmem>>, vector<1x8x128xf32>
    %341 = vector.shape_cast %340 : vector<1x8x128xf32> to vector<8x128xf32>
    %342 = vector.shape_cast %338 : vector<8x128xf32> to vector<1x8x128xf32>
    tpu.vector_store %arg6[%339, %c0_94, %c0_95], %342 {strides = array<i32>} : memref<8x8x128xf32, #tpu.memory_space<vmem>>, vector<1x8x128xf32>,
    %c8_i32 = arith.constant 8 : i32
    %c0_96 = arith.constant 0 : index
    %c0_97 = arith.constant 0 : index
    %343 = vector.load %arg9[%c0_96, %c0_97] : memref<8x128xf32, #tpu.memory_space<vmem>>, vector<8x128xf32>
    tpu.vector_store %arg9[%c0_96, %c0_97], %338 {strides = array<i32>} : memref<8x128xf32, #tpu.memory_space<vmem>>, vector<8x128xf32>,
    %c0_98 = arith.constant 0 : index
    %c0_99 = arith.constant 0 : index
    %344 = vector.load %arg10[%c0_98, %c0_99] : memref<8x128xf32, #tpu.memory_space<vmem>>, vector<8x128xf32>
    tpu.vector_store %arg10[%c0_98, %c0_99], %336 {strides = array<i32>} : memref<8x128xf32, #tpu.memory_space<vmem>>, vector<8x128xf32>,
    %c0_i32_100 = arith.constant 0 : i32
    %345 = arith.cmpi eq, %arg1, %c0_i32_100 : i32
    %346 = arith.extui %345 : i1 to i32
    %c0_i32_101 = arith.constant 0 : i32
    %347 = arith.cmpi ne, %346, %c0_i32_101 : i32
    scf.if %347 {
      %c0_102 = arith.constant 0 : index
      %c0_103 = arith.constant 0 : index
      %348 = vector.load %arg7[%c0_102, %c0_103] : memref<8x128xf32, #tpu.memory_space<vmem>>, vector<8x128xf32>
      tpu.vector_store %arg7[%c0_102, %c0_103], %338 {strides = array<i32>} : memref<8x128xf32, #tpu.memory_space<vmem>>, vector<8x128xf32>,
      %c0_104 = arith.constant 0 : index
      %c0_105 = arith.constant 0 : index
      %349 = vector.load %arg8[%c0_104, %c0_105] : memref<8x128xf32, #tpu.memory_space<vmem>>, vector<8x128xf32>
      tpu.vector_store %arg8[%c0_104, %c0_105], %336 {strides = array<i32>} : memref<8x128xf32, #tpu.memory_space<vmem>>, vector<8x128xf32>,
    } else {
    }
    return
  }
  func.func @transform_0(%arg0: i32, %arg1: i32) -> (i32, i32, i32) {
    %c0_i32 = arith.constant 0 : i32
    %c0_i32_0 = arith.constant 0 : i32
    return %arg1, %arg0, %c0_i32 : i32, i32, i32
  }
  func.func @transform_1(%arg0: i32, %arg1: i32) -> (i32, i32, i32) {
    %c0_i32 = arith.constant 0 : i32
    %c0_i32_0 = arith.constant 0 : i32
    return %arg1, %arg0, %c0_i32 : i32, i32, i32
  }
  func.func @transform_2(%arg0: i32, %arg1: i32) -> (i32, i32) {
    %c0_i32 = arith.constant 0 : i32
    %c0_i32_0 = arith.constant 0 : i32
    %c0_i32_1 = arith.constant 0 : i32
    return %c0_i32, %c0_i32_0 : i32, i32
  }
  func.func @transform_3(%arg0: i32, %arg1: i32) -> (i32, i32) {
    %c0_i32 = arith.constant 0 : i32
    %c0_i32_0 = arith.constant 0 : i32
    %c0_i32_1 = arith.constant 0 : i32
    return %c0_i32, %c0_i32_0 : i32, i32
  }
  func.func @transform_4(%arg0: i32, %arg1: i32) -> (i32, i32, i32) {
    %c0_i32 = arith.constant 0 : i32
    %c0_i32_0 = arith.constant 0 : i32
    return %arg1, %arg0, %c0_i32 : i32, i32, i32
  }
  func.func @transform_5(%arg0: i32, %arg1: i32) -> (i32, i32) {
    %c0_i32 = arith.constant 0 : i32
    %c0_i32_0 = arith.constant 0 : i32
    return %arg0, %c0_i32 : i32, i32
  }
  func.func @transform_6(%arg0: i32, %arg1: i32) -> (i32, i32) {
    %c0_i32 = arith.constant 0 : i32
    %c0_i32_0 = arith.constant 0 : i32
    return %arg0, %c0_i32 : i32, i32
  }
}

</mosaic_0001>

<llo_original>
// kernel: tlstm_forward.1
$region0: #{tlstm_forward.1}
  #allocation0 [shape = 'u32[]', space=smem, size = 0x4, offset = 0x4, fixed_abs, tag = 'smem constant byte address 0x4 - core index']
  #allocation1 [shape = 'u32[72,128]{1,0:T(1,128)}', space=vmem, size = 0x9000, scoped, tag = 'internal scratch']
  #allocation2 [shape = 'f32[8,128]{1,0:T(8,128)}', space=vmem, size = 0x1000, scoped, tag = 'scratch operand']
  #allocation3 [shape = 'f32[8,128]{1,0:T(8,128)}', space=vmem, size = 0x1000, scoped, tag = 'scratch operand']
  %s0 = inlined_call_operand.vmem [shape: f32[8,8,512], index: 0, kind: input, shape index: {}]
  %s1 = inlined_call_operand.vmem [shape: f32[8,8,1], index: 1, kind: input, shape index: {}]
  %s2 = inlined_call_operand.vmem [shape: f32[128,128], index: 2, kind: input, shape index: {}]
  %s3 = inlined_call_operand.vmem [shape: f32[128,512], index: 3, kind: input, shape index: {}]
  %s4 = inlined_call_operand.vmem [shape: f32[8,8,128], index: 4, kind: output, shape index: {0}]
  %s5 = inlined_call_operand.vmem [shape: f32[8,128], index: 5, kind: output, shape index: {1}]
  %s6 = inlined_call_operand.vmem [shape: f32[8,128], index: 6, kind: output, shape index: {2}]
  %7 = xla_tuple %s4, %s5, %s6
  %s8 = sld [smem:[#allocation0]]
  $region50: #{tlstm_forward.1} parent=0
    _
  %s10 = ssub.s32 1, %s8
  %s11 = scalar_select 0, %s10, %s8
  // Predicated region
  $region2: #{tlstm_forward.1} parent=0 // pred_check
    _
  $region3: #{tlstm_forward.1} parent=0 // pred_check_branch
    %13 = sbr.rel (0) target = $region5
  $region4: #{tlstm_forward.1} parent=0 // pred_region
    _
  $region5: #{tlstm_forward.1} parent=0 // pred_fallthru
    _
  // Predicated region
  $region6: #{tlstm_forward.1} parent=0 // pred_check
    _
  $region7: #{tlstm_forward.1} parent=0 // pred_check_branch
    %15 = sbr.rel (0) target = $region9
  $region8: #{tlstm_forward.1} parent=0 // pred_region
    _
  $region9: #{tlstm_forward.1} parent=0 // pred_fallthru
    _
  // Predicated region
  $region10: #{tlstm_forward.1} parent=0 // pred_check
    _
  $region11: #{tlstm_forward.1} parent=0 // pred_check_branch
    %17 = sbr.rel (0) target = $region13
  $region12: #{tlstm_forward.1} parent=0 // pred_region
    _
  $region13: #{tlstm_forward.1} parent=0 // pred_fallthru
    _
  // Predicated region
  $region14: #{tlstm_forward.1} parent=0 // pred_check
    _
  $region15: #{tlstm_forward.1} parent=0 // pred_check_branch
    %19 = sbr.rel (0) target = $region17
  $region16: #{tlstm_forward.1} parent=0 // pred_region
    _
  $region17: #{tlstm_forward.1} parent=0 // pred_fallthru
    _
  %p20 = scmp.eq.s32.totalorder 0, 0
  // Predicated region
  $region18: #{tlstm_forward.1} parent=0 // pred_check
    %p21 = pneg %p20
  $region19: #{tlstm_forward.1} parent=0 // pred_check_branch
    %23 = sbr.rel (%p21) target = $region21
  $region20: #{tlstm_forward.1} parent=0 // pred_region
    %24 = vst [vmem:[#allocation2] sm:$0xff] 0.0
    %25 = vst [vmem:[#allocation3] sm:$0xff] 0.0
  $region21: #{tlstm_forward.1} parent=0 // pred_fallthru
    _
  %v26 = vld [vmem:[%s2] sm:$0xff]
  %v27 = vld [vmem:[%s2 + $0x8] sm:$0xff]
  %v28 = vld [vmem:[%s2 + $0x10] sm:$0xff]
  %v29 = vld [vmem:[%s2 + $0x18] sm:$0xff]
  %v30 = vld [vmem:[%s2 + $0x20] sm:$0xff]
  %v31 = vld [vmem:[%s2 + $0x28] sm:$0xff]
  %v32 = vld [vmem:[%s2 + $0x30] sm:$0xff]
  %v33 = vld [vmem:[%s2 + $0x38] sm:$0xff]
  %v34 = vld [vmem:[%s2 + $0x40] sm:$0xff]
  %v35 = vld [vmem:[%s2 + $0x48] sm:$0xff]
  %v36 = vld [vmem:[%s2 + $0x50] sm:$0xff]
  %v37 = vld [vmem:[%s2 + $0x58] sm:$0xff]
  %v38 = vld [vmem:[%s2 + $0x60] sm:$0xff]
  %v39 = vld [vmem:[%s2 + $0x68] sm:$0xff]
  %v40 = vld [vmem:[%s2 + $0x70] sm:$0xff]
  %v41 = vld [vmem:[%s2 + $0x78] sm:$0xff]
  %v42 = vld [vmem:[%s3] sm:$0xff]
  %v43 = vld [vmem:[%s3 + $0x8] sm:$0xff]
  %v44 = vld [vmem:[%s3 + $0x10] sm:$0xff]
  %v45 = vld [vmem:[%s3 + $0x18] sm:$0xff]
  %v46 = vld [vmem:[%s3 + $0x20] sm:$0xff]
  %v47 = vld [vmem:[%s3 + $0x28] sm:$0xff]
  %v48 = vld [vmem:[%s3 + $0x30] sm:$0xff]
  %v49 = vld [vmem:[%s3 + $0x38] sm:$0xff]
  %v50 = vld [vmem:[%s3 + $0x40] sm:$0xff]
  %v51 = vld [vmem:[%s3 + $0x48] sm:$0xff]
  %v52 = vld [vmem:[%s3 + $0x50] sm:$0xff]
  %v53 = vld [vmem:[%s3 + $0x58] sm:$0xff]
  %v54 = vld [vmem:[%s3 + $0x60] sm:$0xff]
  %v55 = vld [vmem:[%s3 + $0x68] sm:$0xff]
  %v56 = vld [vmem:[%s3 + $0x70] sm:$0xff]
  %v57 = vld [vmem:[%s3 + $0x78] sm:$0xff]
  %v58 = vld [vmem:[%s3 + $0x80] sm:$0xff]
  %v59 = vld [vmem:[%s3 + $0x88] sm:$0xff]
  %v60 = vld [vmem:[%s3 + $0x90] sm:$0xff]
  %v61 = vld [vmem:[%s3 + $0x98] sm:$0xff]
  %v62 = vld [vmem:[%s3 + $0xa0] sm:$0xff]
  %v63 = vld [vmem:[%s3 + $0xa8] sm:$0xff]
  %v64 = vld [vmem:[%s3 + $0xb0] sm:$0xff]
  %v65 = vld [vmem:[%s3 + $0xb8] sm:$0xff]
  %v66 = vld [vmem:[%s3 + $0xc0] sm:$0xff]
  %v67 = vld [vmem:[%s3 + $0xc8] sm:$0xff]
  %v68 = vld [vmem:[%s3 + $0xd0] sm:$0xff]
  %v69 = vld [vmem:[%s3 + $0xd8] sm:$0xff]
  %v70 = vld [vmem:[%s3 + $0xe0] sm:$0xff]
  %v71 = vld [vmem:[%s3 + $0xe8] sm:$0xff]
  %v72 = vld [vmem:[%s3 + $0xf0] sm:$0xff]
  %v73 = vld [vmem:[%s3 + $0xf8] sm:$0xff]
  %v74 = vld [vmem:[%s3 + $0x100] sm:$0xff]
  %v75 = vld [vmem:[%s3 + $0x108] sm:$0xff]
  %v76 = vld [vmem:[%s3 + $0x110] sm:$0xff]
  %v77 = vld [vmem:[%s3 + $0x118] sm:$0xff]
  %v78 = vld [vmem:[%s3 + $0x120] sm:$0xff]
  %v79 = vld [vmem:[%s3 + $0x128] sm:$0xff]
  %v80 = vld [vmem:[%s3 + $0x130] sm:$0xff]
  %v81 = vld [vmem:[%s3 + $0x138] sm:$0xff]
  %v82 = vld [vmem:[%s3 + $0x140] sm:$0xff]
  %v83 = vld [vmem:[%s3 + $0x148] sm:$0xff]
  %v84 = vld [vmem:[%s3 + $0x150] sm:$0xff]
  %v85 = vld [vmem:[%s3 + $0x158] sm:$0xff]
  %v86 = vld [vmem:[%s3 + $0x160] sm:$0xff]
  %v87 = vld [vmem:[%s3 + $0x168] sm:$0xff]
  %v88 = vld [vmem:[%s3 + $0x170] sm:$0xff]
  %v89 = vld [vmem:[%s3 + $0x178] sm:$0xff]
  %v90 = vld [vmem:[%s3 + $0x180] sm:$0xff]
  %v91 = vld [vmem:[%s3 + $0x188] sm:$0xff]
  %v92 = vld [vmem:[%s3 + $0x190] sm:$0xff]
  %v93 = vld [vmem:[%s3 + $0x198] sm:$0xff]
  %v94 = vld [vmem:[%s3 + $0x1a0] sm:$0xff]
  %v95 = vld [vmem:[%s3 + $0x1a8] sm:$0xff]
  %v96 = vld [vmem:[%s3 + $0x1b0] sm:$0xff]
  %v97 = vld [vmem:[%s3 + $0x1b8] sm:$0xff]
  %v98 = vld [vmem:[%s3 + $0x1c0] sm:$0xff]
  %v99 = vld [vmem:[%s3 + $0x1c8] sm:$0xff]
  %v100 = vld [vmem:[%s3 + $0x1d0] sm:$0xff]
  %v101 = vld [vmem:[%s3 + $0x1d8] sm:$0xff]
  %v102 = vld [vmem:[%s3 + $0x1e0] sm:$0xff]
  %v103 = vld [vmem:[%s3 + $0x1e8] sm:$0xff]
  %v104 = vld [vmem:[%s3 + $0x1f0] sm:$0xff]
  %v105 = vld [vmem:[%s3 + $0x1f8] sm:$0xff]
  %v106 = vld [vmem:[#allocation2] sm:$0xff]
  %v107 = vld [vmem:[#allocation3] sm:$0xff]
  %108 = vmatpush.msra.mxu0 %v41
  %109 = vmatpush.msra.mxu0 %v40
  %110 = vmatpush.msra.mxu0 %v39
  %111 = vmatpush.msra.mxu0 %v38
  %112 = vmatpush.msra.mxu0 %v37
  %113 = vmatpush.msra.mxu0 %v36
  %114 = vmatpush.msra.mxu0 %v35
  %115 = vmatpush.msra.mxu0 %v34
  %116 = vmatpush.msra.mxu0 %v33
  %117 = vmatpush.msra.mxu0 %v32
  %118 = vmatpush.msra.mxu0 %v31
  %119 = vmatpush.msra.mxu0 %v30
  %120 = vmatpush.msra.mxu0 %v29
  %121 = vmatpush.msra.mxu0 %v28
  %122 = vmatpush.msra.mxu0 %v27
  %123 = vmatpush.msra.mxu0 %v26
  %124 = vmatmul.f32.gmra.mxu0 %v107
  %v125 = vpop.f32.mrf.mxu0
  %v126 = vadd.f32 0.0, %v125
  %127 = vdwg.mxu0
  %v128 = vtanh.pop %v126
  %v129 = vld [vmem:[%s1] sm:$0xff]
  %131 = vset.pattern.permute.xlu0 0
  %132 = vperm.xlu0 %131, %v129
  %v133 = vpop.permute.xlu0 %132
  %v135 = vmul.f32 %v128, %v133
  %v136 = vsub.f32 %v107, %v135
  %v137 = vld [vmem:[%s0] sm:$0xff]
  %v138 = vld [vmem:[%s0 + $0x8] sm:$0xff]
  %v139 = vld [vmem:[%s0 + $0x10] sm:$0xff]
  %v140 = vld [vmem:[%s0 + $0x18] sm:$0xff]
  %141 = vmatpush.msra.mxu0 %v102
  %142 = vmatpush.msra.mxu0 %v98
  %143 = vmatpush.msra.mxu0 %v94
  %144 = vmatpush.msra.mxu0 %v90
  %145 = vmatpush.msra.mxu0 %v86
  %146 = vmatpush.msra.mxu0 %v82
  %147 = vmatpush.msra.mxu0 %v78
  %148 = vmatpush.msra.mxu0 %v74
  %149 = vmatpush.msra.mxu0 %v70
  %150 = vmatpush.msra.mxu0 %v66
  %151 = vmatpush.msra.mxu0 %v62
  %152 = vmatpush.msra.mxu0 %v58
  %153 = vmatpush.msra.mxu0 %v54
  %154 = vmatpush.msra.mxu0 %v50
  %155 = vmatpush.msra.mxu0 %v46
  %156 = vmatpush.msra.mxu0 %v42
  %157 = vmatmul.f32.gmra.mxu0 %v106
  %v158 = vpop.f32.mrf.mxu0
  %v159 = vadd.f32 0.0, %v158
  %160 = vdwg.mxu0
  %161 = vmatpush.msra.mxu0 %v103
  %162 = vmatpush.msra.mxu0 %v99
  %163 = vmatpush.msra.mxu0 %v95
  %164 = vmatpush.msra.mxu0 %v91
  %165 = vmatpush.msra.mxu0 %v87
  %166 = vmatpush.msra.mxu0 %v83
  %167 = vmatpush.msra.mxu0 %v79
  %168 = vmatpush.msra.mxu0 %v75
  %169 = vmatpush.msra.mxu0 %v71
  %170 = vmatpush.msra.mxu0 %v67
  %171 = vmatpush.msra.mxu0 %v63
  %172 = vmatpush.msra.mxu0 %v59
  %173 = vmatpush.msra.mxu0 %v55
  %174 = vmatpush.msra.mxu0 %v51
  %175 = vmatpush.msra.mxu0 %v47
  %176 = vmatpush.msra.mxu0 %v43
  %177 = vmatmul.f32.gmra.mxu0 %v106
  %v178 = vpop.f32.mrf.mxu0
  %v179 = vadd.f32 0.0, %v178
  %180 = vdwg.mxu0
  %181 = vmatpush.msra.mxu0 %v104
  %182 = vmatpush.msra.mxu0 %v100
  %183 = vmatpush.msra.mxu0 %v96
  %184 = vmatpush.msra.mxu0 %v92
  %185 = vmatpush.msra.mxu0 %v88
  %186 = vmatpush.msra.mxu0 %v84
  %187 = vmatpush.msra.mxu0 %v80
  %188 = vmatpush.msra.mxu0 %v76
  %189 = vmatpush.msra.mxu0 %v72
  %190 = vmatpush.msra.mxu0 %v68
  %191 = vmatpush.msra.mxu0 %v64
  %192 = vmatpush.msra.mxu0 %v60
  %193 = vmatpush.msra.mxu0 %v56
  %194 = vmatpush.msra.mxu0 %v52
  %195 = vmatpush.msra.mxu0 %v48
  %196 = vmatpush.msra.mxu0 %v44
  %197 = vmatmul.f32.gmra.mxu0 %v106
  %v198 = vpop.f32.mrf.mxu0
  %v199 = vadd.f32 0.0, %v198
  %200 = vdwg.mxu0
  %201 = vmatpush.msra.mxu0 %v105
  %202 = vmatpush.msra.mxu0 %v101
  %203 = vmatpush.msra.mxu0 %v97
  %204 = vmatpush.msra.mxu0 %v93
  %205 = vmatpush.msra.mxu0 %v89
  %206 = vmatpush.msra.mxu0 %v85
  %207 = vmatpush.msra.mxu0 %v81
  %208 = vmatpush.msra.mxu0 %v77
  %209 = vmatpush.msra.mxu0 %v73
  %210 = vmatpush.msra.mxu0 %v69
  %211 = vmatpush.msra.mxu0 %v65
  %212 = vmatpush.msra.mxu0 %v61
  %213 = vmatpush.msra.mxu0 %v57
  %214 = vmatpush.msra.mxu0 %v53
  %215 = vmatpush.msra.mxu0 %v49
  %216 = vmatpush.msra.mxu0 %v45
  %217 = vmatmul.f32.gmra.mxu0 %v106
  %v218 = vpop.f32.mrf.mxu0
  %v219 = vadd.f32 0.0, %v218
  %220 = vdwg.mxu0
  %v221 = vadd.f32 %v137, %v159
  %v222 = vadd.f32 %v138, %v179
  %v223 = vadd.f32 %v139, %v199
  %v224 = vadd.f32 %v140, %v219
  %v225 = vxor.u32 %v221, 2147483648
  %v226 = vmul.f32 %v225, 1.442695
  %v227 = vpow.pop %v226
  %v228 = vadd.f32 %v227, 1.0
  %v229 = vrcp.pop %v228
  %v230 = vmul.f32 %v228, %v229
  %v231 = vsub.f32 1.0, %v230
  %v232 = vmul.f32 %v229, %v231
  %v233 = vadd.f32 %v229, %v232
  %vm234 = vweird.f32 %v228
  %vm235 = vweird.f32 %v229
  %vm236 = vmor %vm234, %vm235
  %v237 = vsel %vm236, %v229, %v233
  %v238 = vand.u32 2147483647, %v228
  %vm239 = vcmp.eq.f32.partialorder %v238, 8.507059e+37
  %v240 = vand.u32 %v228, 2147483648
  %v241 = vor.u32 1.1754944e-38, %v240
  %v242 = vsel %vm239, %v241, %v237
  %v243 = vmul.f32 1.0, %v242
  %v244 = vxor.u32 %v222, 2147483648
  %v245 = vmul.f32 %v244, 1.442695
  %v246 = vpow.pop %v245
  %v247 = vadd.f32 %v246, 1.0
  %v248 = vrcp.pop %v247
  %v249 = vmul.f32 %v247, %v248
  %v250 = vsub.f32 1.0, %v249
  %v251 = vmul.f32 %v248, %v250
  %v252 = vadd.f32 %v248, %v251
  %vm253 = vweird.f32 %v247
  %vm254 = vweird.f32 %v248
  %vm255 = vmor %vm253, %vm254
  %v256 = vsel %vm255, %v248, %v252
  %v257 = vand.u32 2147483647, %v247
  %vm258 = vcmp.eq.f32.partialorder %v257, 8.507059e+37
  %v259 = vand.u32 %v247, 2147483648
  %v260 = vor.u32 1.1754944e-38, %v259
  %v261 = vsel %vm258, %v260, %v256
  %v262 = vmul.f32 1.0, %v261
  %v263 = vtanh.pop %v223
  %v264 = vxor.u32 %v224, 2147483648
  %v265 = vmul.f32 %v264, 1.442695
  %v266 = vpow.pop %v265
  %v267 = vadd.f32 %v266, 1.0
  %v268 = vrcp.pop %v267
  %v269 = vmul.f32 %v267, %v268
  %v270 = vsub.f32 1.0, %v269
  %v271 = vmul.f32 %v268, %v270
  %v272 = vadd.f32 %v268, %v271
  %vm273 = vweird.f32 %v267
  %vm274 = vweird.f32 %v268
  %vm275 = vmor %vm273, %vm274
  %v276 = vsel %vm275, %v268, %v272
  %v277 = vand.u32 2147483647, %v267
  %vm278 = vcmp.eq.f32.partialorder %v277, 8.507059e+37
  %v279 = vand.u32 %v267, 2147483648
  %v280 = vor.u32 1.1754944e-38, %v279
  %v281 = vsel %vm278, %v280, %v276
  %v282 = vmul.f32 1.0, %v281
  %v283 = vmul.f32 %v262, %v136
  %v284 = vmul.f32 %v243, %v263
  %v285 = vadd.f32 %v283, %v284
  %v286 = vtanh.pop %v285
  %v287 = vmul.f32 %v282, %v286
  %288 = vst [vmem:[%s4] sm:$0xff] %v287
  %289 = vmatpush.msra.mxu0 %v41
  %290 = vmatpush.msra.mxu0 %v40
  %291 = vmatpush.msra.mxu0 %v39
  %292 = vmatpush.msra.mxu0 %v38
  %293 = vmatpush.msra.mxu0 %v37
  %294 = vmatpush.msra.mxu0 %v36
  %295 = vmatpush.msra.mxu0 %v35
  %296 = vmatpush.msra.mxu0 %v34
  %297 = vmatpush.msra.mxu0 %v33
  %298 = vmatpush.msra.mxu0 %v32
  %299 = vmatpush.msra.mxu0 %v31
  %300 = vmatpush.msra.mxu0 %v30
  %301 = vmatpush.msra.mxu0 %v29
  %302 = vmatpush.msra.mxu0 %v28
  %303 = vmatpush.msra.mxu0 %v27
  %304 = vmatpush.msra.mxu0 %v26
  %305 = vmatmul.f32.gmra.mxu0 %v285
  %v306 = vpop.f32.mrf.mxu0
  %v307 = vadd.f32 0.0, %v306
  %308 = vdwg.mxu0
  %v309 = vtanh.pop %v307
  %s310 = scalar_lea.vmem %s1, 8
  %v311 = vld [vmem:[%s310] sm:$0xff]
  %313 = vset.pattern.permute.xlu0 0
  %314 = vperm.xlu0 %313, %v311
  %v315 = vpop.permute.xlu0 %314
  %v317 = vmul.f32 %v309, %v315
  %v318 = vsub.f32 %v285, %v317
  %s319 = scalar_lea.vmem %s0, 32
  %v320 = vld [vmem:[%s319] sm:$0xff]
  %v321 = vld [vmem:[%s319 + $0x8] sm:$0xff]
  %v322 = vld [vmem:[%s319 + $0x10] sm:$0xff]
  %v323 = vld [vmem:[%s319 + $0x18] sm:$0xff]
  %324 = vmatpush.msra.mxu0 %v102
  %325 = vmatpush.msra.mxu0 %v98
  %326 = vmatpush.msra.mxu0 %v94
  %327 = vmatpush.msra.mxu0 %v90
  %328 = vmatpush.msra.mxu0 %v86
  %329 = vmatpush.msra.mxu0 %v82
  %330 = vmatpush.msra.mxu0 %v78
  %331 = vmatpush.msra.mxu0 %v74
  %332 = vmatpush.msra.mxu0 %v70
  %333 = vmatpush.msra.mxu0 %v66
  %334 = vmatpush.msra.mxu0 %v62
  %335 = vmatpush.msra.mxu0 %v58
  %336 = vmatpush.msra.mxu0 %v54
  %337 = vmatpush.msra.mxu0 %v50
  %338 = vmatpush.msra.mxu0 %v46
  %339 = vmatpush.msra.mxu0 %v42
  %340 = vmatmul.f32.gmra.mxu0 %v287
  %v341 = vpop.f32.mrf.mxu0
  %v342 = vadd.f32 0.0, %v341
  %343 = vdwg.mxu0
  %344 = vmatpush.msra.mxu0 %v103
  %345 = vmatpush.msra.mxu0 %v99
  %346 = vmatpush.msra.mxu0 %v95
  %347 = vmatpush.msra.mxu0 %v91
  %348 = vmatpush.msra.mxu0 %v87
  %349 = vmatpush.msra.mxu0 %v83
  %350 = vmatpush.msra.mxu0 %v79
  %351 = vmatpush.msra.mxu0 %v75
  %352 = vmatpush.msra.mxu0 %v71
  %353 = vmatpush.msra.mxu0 %v67
  %354 = vmatpush.msra.mxu0 %v63
  %355 = vmatpush.msra.mxu0 %v59
  %356 = vmatpush.msra.mxu0 %v55
  %357 = vmatpush.msra.mxu0 %v51
  %358 = vmatpush.msra.mxu0 %v47
  %359 = vmatpush.msra.mxu0 %v43
  %360 = vmatmul.f32.gmra.mxu0 %v287
  %v361 = vpop.f32.mrf.mxu0
  %v362 = vadd.f32 0.0, %v361
  %363 = vdwg.mxu0
  %364 = vmatpush.msra.mxu0 %v104
  %365 = vmatpush.msra.mxu0 %v100
  %366 = vmatpush.msra.mxu0 %v96
  %367 = vmatpush.msra.mxu0 %v92
  %368 = vmatpush.msra.mxu0 %v88
  %369 = vmatpush.msra.mxu0 %v84
  %370 = vmatpush.msra.mxu0 %v80
  %371 = vmatpush.msra.mxu0 %v76
  %372 = vmatpush.msra.mxu0 %v72
  %373 = vmatpush.msra.mxu0 %v68
  %374 = vmatpush.msra.mxu0 %v64
  %375 = vmatpush.msra.mxu0 %v60
  %376 = vmatpush.msra.mxu0 %v56
  %377 = vmatpush.msra.mxu0 %v52
  %378 = vmatpush.msra.mxu0 %v48
  %379 = vmatpush.msra.mxu0 %v44
  %380 = vmatmul.f32.gmra.mxu0 %v287
  %v381 = vpop.f32.mrf.mxu0
  %v382 = vadd.f32 0.0, %v381
  %383 = vdwg.mxu0
  %384 = vmatpush.msra.mxu0 %v105
  %385 = vmatpush.msra.mxu0 %v101
  %386 = vmatpush.msra.mxu0 %v97
  %387 = vmatpush.msra.mxu0 %v93
  %388 = vmatpush.msra.mxu0 %v89
  %389 = vmatpush.msra.mxu0 %v85
  %390 = vmatpush.msra.mxu0 %v81
  %391 = vmatpush.msra.mxu0 %v77
  %392 = vmatpush.msra.mxu0 %v73
  %393 = vmatpush.msra.mxu0 %v69
  %394 = vmatpush.msra.mxu0 %v65
  %395 = vmatpush.msra.mxu0 %v61
  %396 = vmatpush.msra.mxu0 %v57
  %397 = vmatpush.msra.mxu0 %v53
  %398 = vmatpush.msra.mxu0 %v49
  %399 = vmatpush.msra.mxu0 %v45
  %400 = vmatmul.f32.gmra.mxu0 %v287
  %v401 = vpop.f32.mrf.mxu0
  %v402 = vadd.f32 0.0, %v401
  %403 = vdwg.mxu0
  %v404 = vadd.f32 %v320, %v342
  %v405 = vadd.f32 %v321, %v362
  %v406 = vadd.f32 %v322, %v382
  %v407 = vadd.f32 %v323, %v402
  %v408 = vxor.u32 %v404, 2147483648
  %v409 = vmul.f32 %v408, 1.442695
  %v410 = vpow.pop %v409
  %v411 = vadd.f32 %v410, 1.0
  %v412 = vrcp.pop %v411
  %v413 = vmul.f32 %v411, %v412
  %v414 = vsub.f32 1.0, %v413
  %v415 = vmul.f32 %v412, %v414
  %v416 = vadd.f32 %v412, %v415
  %vm417 = vweird.f32 %v411
  %vm418 = vweird.f32 %v412
  %vm419 = vmor %vm417, %vm418
  %v420 = vsel %vm419, %v412, %v416
  %v421 = vand.u32 2147483647, %v411
  %vm422 = vcmp.eq.f32.partialorder %v421, 8.507059e+37
  %v423 = vand.u32 %v411, 2147483648
  %v424 = vor.u32 1.1754944e-38, %v423
  %v425 = vsel %vm422, %v424, %v420
  %v426 = vmul.f32 1.0, %v425
  %v427 = vxor.u32 %v405, 2147483648
  %v428 = vmul.f32 %v427, 1.442695
  %v429 = vpow.pop %v428
  %v430 = vadd.f32 %v429, 1.0
  %v431 = vrcp.pop %v430
  %v432 = vmul.f32 %v430, %v431
  %v433 = vsub.f32 1.0, %v432
  %v434 = vmul.f32 %v431, %v433
  %v435 = vadd.f32 %v431, %v434
  %vm436 = vweird.f32 %v430
  %vm437 = vweird.f32 %v431
  %vm438 = vmor %vm436, %vm437
  %v439 = vsel %vm438, %v431, %v435
  %v440 = vand.u32 2147483647, %v430
  %vm441 = vcmp.eq.f32.partialorder %v440, 8.507059e+37
  %v442 = vand.u32 %v430, 2147483648
  %v443 = vor.u32 1.1754944e-38, %v442
  %v444 = vsel %vm441, %v443, %v439
  %v445 = vmul.f32 1.0, %v444
  %v446 = vtanh.pop %v406
  %v447 = vxor.u32 %v407, 2147483648
  %v448 = vmul.f32 %v447, 1.442695
  %v449 = vpow.pop %v448
  %v450 = vadd.f32 %v449, 1.0
  %v451 = vrcp.pop %v450
  %v452 = vmul.f32 %v450, %v451
  %v453 = vsub.f32 1.0, %v452
  %v454 = vmul.f32 %v451, %v453
  %v455 = vadd.f32 %v451, %v454
  %vm456 = vweird.f32 %v450
  %vm457 = vweird.f32 %v451
  %vm458 = vmor %vm456, %vm457
  %v459 = vsel %vm458, %v451, %v455
  %v460 = vand.u32 2147483647, %v450
  %vm461 = vcmp.eq.f32.partialorder %v460, 8.507059e+37
  %v462 = vand.u32 %v450, 2147483648
  %v463 = vor.u32 1.1754944e-38, %v462
  %v464 = vsel %vm461, %v463, %v459
  %v465 = vmul.f32 1.0, %v464
  %v466 = vmul.f32 %v445, %v318
  %v467 = vmul.f32 %v426, %v446
  %v468 = vadd.f32 %v466, %v467
  %v469 = vtanh.pop %v468
  %v470 = vmul.f32 %v465, %v469
  %s471 = scalar_lea.vmem %s4, 8
  %472 = vst [vmem:[%s471] sm:$0xff] %v470
  %473 = vmatpush.msra.mxu0 %v41
  %474 = vmatpush.msra.mxu0 %v40
  %475 = vmatpush.msra.mxu0 %v39
  %476 = vmatpush.msra.mxu0 %v38
  %477 = vmatpush.msra.mxu0 %v37
  %478 = vmatpush.msra.mxu0 %v36
  %479 = vmatpush.msra.mxu0 %v35
  %480 = vmatpush.msra.mxu0 %v34
  %481 = vmatpush.msra.mxu0 %v33
  %482 = vmatpush.msra.mxu0 %v32
  %483 = vmatpush.msra.mxu0 %v31
  %484 = vmatpush.msra.mxu0 %v30
  %485 = vmatpush.msra.mxu0 %v29
  %486 = vmatpush.msra.mxu0 %v28
  %487 = vmatpush.msra.mxu0 %v27
  %488 = vmatpush.msra.mxu0 %v26
  %489 = vmatmul.f32.gmra.mxu0 %v468
  %v490 = vpop.f32.mrf.mxu0
  %v491 = vadd.f32 0.0, %v490
  %492 = vdwg.mxu0
  %v493 = vtanh.pop %v491
  %s494 = scalar_lea.vmem %s1, 16
  %v495 = vld [vmem:[%s494] sm:$0xff]
  %497 = vset.pattern.permute.xlu0 0
  %498 = vperm.xlu0 %497, %v495
  %v499 = vpop.permute.xlu0 %498
  %v501 = vmul.f32 %v493, %v499
  %v502 = vsub.f32 %v468, %v501
  %s503 = scalar_lea.vmem %s0, 64
  %v504 = vld [vmem:[%s503] sm:$0xff]
  %v505 = vld [vmem:[%s503 + $0x8] sm:$0xff]
  %v506 = vld [vmem:[%s503 + $0x10] sm:$0xff]
  %v507 = vld [vmem:[%s503 + $0x18] sm:$0xff]
  %508 = vmatpush.msra.mxu0 %v102
  %509 = vmatpush.msra.mxu0 %v98
  %510 = vmatpush.msra.mxu0 %v94
  %511 = vmatpush.msra.mxu0 %v90
  %512 = vmatpush.msra.mxu0 %v86
  %513 = vmatpush.msra.mxu0 %v82
  %514 = vmatpush.msra.mxu0 %v78
  %515 = vmatpush.msra.mxu0 %v74
  %516 = vmatpush.msra.mxu0 %v70
  %517 = vmatpush.msra.mxu0 %v66
  %518 = vmatpush.msra.mxu0 %v62
  %519 = vmatpush.msra.mxu0 %v58
  %520 = vmatpush.msra.mxu0 %v54
  %521 = vmatpush.msra.mxu0 %v50
  %522 = vmatpush.msra.mxu0 %v46
  %523 = vmatpush.msra.mxu0 %v42
  %524 = vmatmul.f32.gmra.mxu0 %v470
  %v525 = vpop.f32.mrf.mxu0
  %v526 = vadd.f32 0.0, %v525
  %527 = vdwg.mxu0
  %528 = vmatpush.msra.mxu0 %v103
  %529 = vmatpush.msra.mxu0 %v99
  %530 = vmatpush.msra.mxu0 %v95
  %531 = vmatpush.msra.mxu0 %v91
  %532 = vmatpush.msra.mxu0 %v87
  %533 = vmatpush.msra.mxu0 %v83
  %534 = vmatpush.msra.mxu0 %v79
  %535 = vmatpush.msra.mxu0 %v75
  %536 = vmatpush.msra.mxu0 %v71
  %537 = vmatpush.msra.mxu0 %v67
  %538 = vmatpush.msra.mxu0 %v63
  %539 = vmatpush.msra.mxu0 %v59
  %540 = vmatpush.msra.mxu0 %v55
  %541 = vmatpush.msra.mxu0 %v51
  %542 = vmatpush.msra.mxu0 %v47
  %543 = vmatpush.msra.mxu0 %v43
  %544 = vmatmul.f32.gmra.mxu0 %v470
  %v545 = vpop.f32.mrf.mxu0
  %v546 = vadd.f32 0.0, %v545
  %547 = vdwg.mxu0
  %548 = vmatpush.msra.mxu0 %v104
  %549 = vmatpush.msra.mxu0 %v100
  %550 = vmatpush.msra.mxu0 %v96
  %551 = vmatpush.msra.mxu0 %v92
  %552 = vmatpush.msra.mxu0 %v88
  %553 = vmatpush.msra.mxu0 %v84
  %554 = vmatpush.msra.mxu0 %v80
  %555 = vmatpush.msra.mxu0 %v76
  %556 = vmatpush.msra.mxu0 %v72
  %557 = vmatpush.msra.mxu0 %v68
  %558 = vmatpush.msra.mxu0 %v64
  %559 = vmatpush.msra.mxu0 %v60
  %560 = vmatpush.msra.mxu0 %v56
  %561 = vmatpush.msra.mxu0 %v52
  %562 = vmatpush.msra.mxu0 %v48
  %563 = vmatpush.msra.mxu0 %v44
  %564 = vmatmul.f32.gmra.mxu0 %v470
  %v565 = vpop.f32.mrf.mxu0
  %v566 = vadd.f32 0.0, %v565
  %567 = vdwg.mxu0
  %568 = vmatpush.msra.mxu0 %v105
  %569 = vmatpush.msra.mxu0 %v101
  %570 = vmatpush.msra.mxu0 %v97
  %571 = vmatpush.msra.mxu0 %v93
  %572 = vmatpush.msra.mxu0 %v89
  %573 = vmatpush.msra.mxu0 %v85
  %574 = vmatpush.msra.mxu0 %v81
  %575 = vmatpush.msra.mxu0 %v77
  %576 = vmatpush.msra.mxu0 %v73
  %577 = vmatpush.msra.mxu0 %v69
  %578 = vmatpush.msra.mxu0 %v65
  %579 = vmatpush.msra.mxu0 %v61
  %580 = vmatpush.msra.mxu0 %v57
  %581 = vmatpush.msra.mxu0 %v53
  %582 = vmatpush.msra.mxu0 %v49
  %583 = vmatpush.msra.mxu0 %v45
  %584 = vmatmul.f32.gmra.mxu0 %v470
  %v585 = vpop.f32.mrf.mxu0
  %v586 = vadd.f32 0.0, %v585
  %587 = vdwg.mxu0
  %v588 = vadd.f32 %v504, %v526
  %v589 = vadd.f32 %v505, %v546
  %v590 = vadd.f32 %v506, %v566
  %v591 = vadd.f32 %v507, %v586
  %v592 = vxor.u32 %v588, 2147483648
  %v593 = vmul.f32 %v592, 1.442695
  %v594 = vpow.pop %v593
  %v595 = vadd.f32 %v594, 1.0
  %v596 = vrcp.pop %v595
  %v597 = vmul.f32 %v595, %v596
  %v598 = vsub.f32 1.0, %v597
  %v599 = vmul.f32 %v596, %v598
  %v600 = vadd.f32 %v596, %v599
  %vm601 = vweird.f32 %v595
  %vm602 = vweird.f32 %v596
  %vm603 = vmor %vm601, %vm602
  %v604 = vsel %vm603, %v596, %v600
  %v605 = vand.u32 2147483647, %v595
  %vm606 = vcmp.eq.f32.partialorder %v605, 8.507059e+37
  %v607 = vand.u32 %v595, 2147483648
  %v608 = vor.u32 1.1754944e-38, %v607
  %v609 = vsel %vm606, %v608, %v604
  %v610 = vmul.f32 1.0, %v609
  %v611 = vxor.u32 %v589, 2147483648
  %v612 = vmul.f32 %v611, 1.442695
  %v613 = vpow.pop %v612
  %v614 = vadd.f32 %v613, 1.0
  %v615 = vrcp.pop %v614
  %v616 = vmul.f32 %v614, %v615
  %v617 = vsub.f32 1.0, %v616
  %v618 = vmul.f32 %v615, %v617
  %v619 = vadd.f32 %v615, %v618
  %vm620 = vweird.f32 %v614
  %vm621 = vweird.f32 %v615
  %vm622 = vmor %vm620, %vm621
  %v623 = vsel %vm622, %v615, %v619
  %v624 = vand.u32 2147483647, %v614
  %vm625 = vcmp.eq.f32.partialorder %v624, 8.507059e+37
  %v626 = vand.u32 %v614, 2147483648
  %v627 = vor.u32 1.1754944e-38, %v626
  %v628 = vsel %vm625, %v627, %v623
  %v629 = vmul.f32 1.0, %v628
  %v630 = vtanh.pop %v590
  %v631 = vxor.u32 %v591, 2147483648
  %v632 = vmul.f32 %v631, 1.442695
  %v633 = vpow.pop %v632
  %v634 = vadd.f32 %v633, 1.0
  %v635 = vrcp.pop %v634
  %v636 = vmul.f32 %v634, %v635
  %v637 = vsub.f32 1.0, %v636
  %v638 = vmul.f32 %v635, %v637
  %v639 = vadd.f32 %v635, %v638
  %vm640 = vweird.f32 %v634
  %vm641 = vweird.f32 %v635
  %vm642 = vmor %vm640, %vm641
  %v643 = vsel %vm642, %v635, %v639
  %v644 = vand.u32 2147483647, %v634
  %vm645 = vcmp.eq.f32.partialorder %v644, 8.507059e+37
  %v646 = vand.u32 %v634, 2147483648
  %v647 = vor.u32 1.1754944e-38, %v646
  %v648 = vsel %vm645, %v647, %v643
  %v649 = vmul.f32 1.0, %v648
  %v650 = vmul.f32 %v629, %v502
  %v651 = vmul.f32 %v610, %v630
  %v652 = vadd.f32 %v650, %v651
  %v653 = vtanh.pop %v652
  %v654 = vmul.f32 %v649, %v653
  %s655 = scalar_lea.vmem %s4, 16
  %656 = vst [vmem:[%s655] sm:$0xff] %v654
  %657 = vmatpush.msra.mxu0 %v41
  %658 = vmatpush.msra.mxu0 %v40
  %659 = vmatpush.msra.mxu0 %v39
  %660 = vmatpush.msra.mxu0 %v38
  %661 = vmatpush.msra.mxu0 %v37
  %662 = vmatpush.msra.mxu0 %v36
  %663 = vmatpush.msra.mxu0 %v35
  %664 = vmatpush.msra.mxu0 %v34
  %665 = vmatpush.msra.mxu0 %v33
  %666 = vmatpush.msra.mxu0 %v32
  %667 = vmatpush.msra.mxu0 %v31
  %668 = vmatpush.msra.mxu0 %v30
  %669 = vmatpush.msra.mxu0 %v29
  %670 = vmatpush.msra.mxu0 %v28
  %671 = vmatpush.msra.mxu0 %v27
  %672 = vmatpush.msra.mxu0 %v26
  %673 = vmatmul.f32.gmra.mxu0 %v652
  %v674 = vpop.f32.mrf.mxu0
  %v675 = vadd.f32 0.0, %v674
  %676 = vdwg.mxu0
  %v677 = vtanh.pop %v675
  %s678 = scalar_lea.vmem %s1, 24
  %v679 = vld [vmem:[%s678] sm:$0xff]
  %681 = vset.pattern.permute.xlu0 0
  %682 = vperm.xlu0 %681, %v679
  %v683 = vpop.permute.xlu0 %682
  %v685 = vmul.f32 %v677, %v683
  %v686 = vsub.f32 %v652, %v685
  %s687 = scalar_lea.vmem %s0, 96
  %v688 = vld [vmem:[%s687] sm:$0xff]
  %v689 = vld [vmem:[%s687 + $0x8] sm:$0xff]
  %v690 = vld [vmem:[%s687 + $0x10] sm:$0xff]
  %v691 = vld [vmem:[%s687 + $0x18] sm:$0xff]
  %692 = vmatpush.msra.mxu0 %v102
  %693 = vmatpush.msra.mxu0 %v98
  %694 = vmatpush.msra.mxu0 %v94
  %695 = vmatpush.msra.mxu0 %v90
  %696 = vmatpush.msra.mxu0 %v86
  %697 = vmatpush.msra.mxu0 %v82
  %698 = vmatpush.msra.mxu0 %v78
  %699 = vmatpush.msra.mxu0 %v74
  %700 = vmatpush.msra.mxu0 %v70
  %701 = vmatpush.msra.mxu0 %v66
  %702 = vmatpush.msra.mxu0 %v62
  %703 = vmatpush.msra.mxu0 %v58
  %704 = vmatpush.msra.mxu0 %v54
  %705 = vmatpush.msra.mxu0 %v50
  %706 = vmatpush.msra.mxu0 %v46
  %707 = vmatpush.msra.mxu0 %v42
  %708 = vmatmul.f32.gmra.mxu0 %v654
  %v709 = vpop.f32.mrf.mxu0
  %v710 = vadd.f32 0.0, %v709
  %711 = vdwg.mxu0
  %712 = vmatpush.msra.mxu0 %v103
  %713 = vmatpush.msra.mxu0 %v99
  %714 = vmatpush.msra.mxu0 %v95
  %715 = vmatpush.msra.mxu0 %v91
  %716 = vmatpush.msra.mxu0 %v87
  %717 = vmatpush.msra.mxu0 %v83
  %718 = vmatpush.msra.mxu0 %v79
  %719 = vmatpush.msra.mxu0 %v75
  %720 = vmatpush.msra.mxu0 %v71
  %721 = vmatpush.msra.mxu0 %v67
  %722 = vmatpush.msra.mxu0 %v63
  %723 = vmatpush.msra.mxu0 %v59
  %724 = vmatpush.msra.mxu0 %v55
  %725 = vmatpush.msra.mxu0 %v51
  %726 = vmatpush.msra.mxu0 %v47
  %727 = vmatpush.msra.mxu0 %v43
  %728 = vmatmul.f32.gmra.mxu0 %v654
  %v729 = vpop.f32.mrf.mxu0
  %v730 = vadd.f32 0.0, %v729
  %731 = vdwg.mxu0
  %732 = vmatpush.msra.mxu0 %v104
  %733 = vmatpush.msra.mxu0 %v100
  %734 = vmatpush.msra.mxu0 %v96
  %735 = vmatpush.msra.mxu0 %v92
  %736 = vmatpush.msra.mxu0 %v88
  %737 = vmatpush.msra.mxu0 %v84
  %738 = vmatpush.msra.mxu0 %v80
  %739 = vmatpush.msra.mxu0 %v76
  %740 = vmatpush.msra.mxu0 %v72
  %741 = vmatpush.msra.mxu0 %v68
  %742 = vmatpush.msra.mxu0 %v64
  %743 = vmatpush.msra.mxu0 %v60
  %744 = vmatpush.msra.mxu0 %v56
  %745 = vmatpush.msra.mxu0 %v52
  %746 = vmatpush.msra.mxu0 %v48
  %747 = vmatpush.msra.mxu0 %v44
  %748 = vmatmul.f32.gmra.mxu0 %v654
  %v749 = vpop.f32.mrf.mxu0
  %v750 = vadd.f32 0.0, %v749
  %751 = vdwg.mxu0
  %752 = vmatpush.msra.mxu0 %v105
  %753 = vmatpush.msra.mxu0 %v101
  %754 = vmatpush.msra.mxu0 %v97
  %755 = vmatpush.msra.mxu0 %v93
  %756 = vmatpush.msra.mxu0 %v89
  %757 = vmatpush.msra.mxu0 %v85
  %758 = vmatpush.msra.mxu0 %v81
  %759 = vmatpush.msra.mxu0 %v77
  %760 = vmatpush.msra.mxu0 %v73
  %761 = vmatpush.msra.mxu0 %v69
  %762 = vmatpush.msra.mxu0 %v65
  %763 = vmatpush.msra.mxu0 %v61
  %764 = vmatpush.msra.mxu0 %v57
  %765 = vmatpush.msra.mxu0 %v53
  %766 = vmatpush.msra.mxu0 %v49
  %767 = vmatpush.msra.mxu0 %v45
  %768 = vmatmul.f32.gmra.mxu0 %v654
  %v769 = vpop.f32.mrf.mxu0
  %v770 = vadd.f32 0.0, %v769
  %771 = vdwg.mxu0
  %v772 = vadd.f32 %v688, %v710
  %v773 = vadd.f32 %v689, %v730
  %v774 = vadd.f32 %v690, %v750
  %v775 = vadd.f32 %v691, %v770
  %v776 = vxor.u32 %v772, 2147483648
  %v777 = vmul.f32 %v776, 1.442695
  %v778 = vpow.pop %v777
  %v779 = vadd.f32 %v778, 1.0
  %v780 = vrcp.pop %v779
  %v781 = vmul.f32 %v779, %v780
  %v782 = vsub.f32 1.0, %v781
  %v783 = vmul.f32 %v780, %v782
  %v784 = vadd.f32 %v780, %v783
  %vm785 = vweird.f32 %v779
  %vm786 = vweird.f32 %v780
  %vm787 = vmor %vm785, %vm786
  %v788 = vsel %vm787, %v780, %v784
  %v789 = vand.u32 2147483647, %v779
  %vm790 = vcmp.eq.f32.partialorder %v789, 8.507059e+37
  %v791 = vand.u32 %v779, 2147483648
  %v792 = vor.u32 1.1754944e-38, %v791
  %v793 = vsel %vm790, %v792, %v788
  %v794 = vmul.f32 1.0, %v793
  %v795 = vxor.u32 %v773, 2147483648
  %v796 = vmul.f32 %v795, 1.442695
  %v797 = vpow.pop %v796
  %v798 = vadd.f32 %v797, 1.0
  %v799 = vrcp.pop %v798
  %v800 = vmul.f32 %v798, %v799
  %v801 = vsub.f32 1.0, %v800
  %v802 = vmul.f32 %v799, %v801
  %v803 = vadd.f32 %v799, %v802
  %vm804 = vweird.f32 %v798
  %vm805 = vweird.f32 %v799
  %vm806 = vmor %vm804, %vm805
  %v807 = vsel %vm806, %v799, %v803
  %v808 = vand.u32 2147483647, %v798
  %vm809 = vcmp.eq.f32.partialorder %v808, 8.507059e+37
  %v810 = vand.u32 %v798, 2147483648
  %v811 = vor.u32 1.1754944e-38, %v810
  %v812 = vsel %vm809, %v811, %v807
  %v813 = vmul.f32 1.0, %v812
  %v814 = vtanh.pop %v774
  %v815 = vxor.u32 %v775, 2147483648
  %v816 = vmul.f32 %v815, 1.442695
  %v817 = vpow.pop %v816
  %v818 = vadd.f32 %v817, 1.0
  %v819 = vrcp.pop %v818
  %v820 = vmul.f32 %v818, %v819
  %v821 = vsub.f32 1.0, %v820
  %v822 = vmul.f32 %v819, %v821
  %v823 = vadd.f32 %v819, %v822
  %vm824 = vweird.f32 %v818
  %vm825 = vweird.f32 %v819
  %vm826 = vmor %vm824, %vm825
  %v827 = vsel %vm826, %v819, %v823
  %v828 = vand.u32 2147483647, %v818
  %vm829 = vcmp.eq.f32.partialorder %v828, 8.507059e+37
  %v830 = vand.u32 %v818, 2147483648
  %v831 = vor.u32 1.1754944e-38, %v830
  %v832 = vsel %vm829, %v831, %v827
  %v833 = vmul.f32 1.0, %v832
  %v834 = vmul.f32 %v813, %v686
  %v835 = vmul.f32 %v794, %v814
  %v836 = vadd.f32 %v834, %v835
  %v837 = vtanh.pop %v836
  %v838 = vmul.f32 %v833, %v837
  %s839 = scalar_lea.vmem %s4, 24
  %840 = vst [vmem:[%s839] sm:$0xff] %v838
  %841 = vmatpush.msra.mxu0 %v41
  %842 = vmatpush.msra.mxu0 %v40
  %843 = vmatpush.msra.mxu0 %v39
  %844 = vmatpush.msra.mxu0 %v38
  %845 = vmatpush.msra.mxu0 %v37
  %846 = vmatpush.msra.mxu0 %v36
  %847 = vmatpush.msra.mxu0 %v35
  %848 = vmatpush.msra.mxu0 %v34
  %849 = vmatpush.msra.mxu0 %v33
  %850 = vmatpush.msra.mxu0 %v32
  %851 = vmatpush.msra.mxu0 %v31
  %852 = vmatpush.msra.mxu0 %v30
  %853 = vmatpush.msra.mxu0 %v29
  %854 = vmatpush.msra.mxu0 %v28
  %855 = vmatpush.msra.mxu0 %v27
  %856 = vmatpush.msra.mxu0 %v26
  %857 = vmatmul.f32.gmra.mxu0 %v836
  %v858 = vpop.f32.mrf.mxu0
  %v859 = vadd.f32 0.0, %v858
  %860 = vdwg.mxu0
  %v861 = vtanh.pop %v859
  %s862 = scalar_lea.vmem %s1, 32
  %v863 = vld [vmem:[%s862] sm:$0xff]
  %865 = vset.pattern.permute.xlu0 0
  %866 = vperm.xlu0 %865, %v863
  %v867 = vpop.permute.xlu0 %866
  %v869 = vmul.f32 %v861, %v867
  %v870 = vsub.f32 %v836, %v869
  %s871 = scalar_lea.vmem %s0, 128
  %v872 = vld [vmem:[%s871] sm:$0xff]
  %v873 = vld [vmem:[%s871 + $0x8] sm:$0xff]
  %v874 = vld [vmem:[%s871 + $0x10] sm:$0xff]
  %v875 = vld [vmem:[%s871 + $0x18] sm:$0xff]
  %876 = vmatpush.msra.mxu0 %v102
  %877 = vmatpush.msra.mxu0 %v98
  %878 = vmatpush.msra.mxu0 %v94
  %879 = vmatpush.msra.mxu0 %v90
  %880 = vmatpush.msra.mxu0 %v86
  %881 = vmatpush.msra.mxu0 %v82
  %882 = vmatpush.msra.mxu0 %v78
  %883 = vmatpush.msra.mxu0 %v74
  %884 = vmatpush.msra.mxu0 %v70
  %885 = vmatpush.msra.mxu0 %v66
  %886 = vmatpush.msra.mxu0 %v62
  %887 = vmatpush.msra.mxu0 %v58
  %888 = vmatpush.msra.mxu0 %v54
  %889 = vmatpush.msra.mxu0 %v50
  %890 = vmatpush.msra.mxu0 %v46
  %891 = vmatpush.msra.mxu0 %v42
  %892 = vmatmul.f32.gmra.mxu0 %v838
  %v893 = vpop.f32.mrf.mxu0
  %v894 = vadd.f32 0.0, %v893
  %895 = vdwg.mxu0
  %896 = vmatpush.msra.mxu0 %v103
  %897 = vmatpush.msra.mxu0 %v99
  %898 = vmatpush.msra.mxu0 %v95
  %899 = vmatpush.msra.mxu0 %v91
  %900 = vmatpush.msra.mxu0 %v87
  %901 = vmatpush.msra.mxu0 %v83
  %902 = vmatpush.msra.mxu0 %v79
  %903 = vmatpush.msra.mxu0 %v75
  %904 = vmatpush.msra.mxu0 %v71
  %905 = vmatpush.msra.mxu0 %v67
  %906 = vmatpush.msra.mxu0 %v63
  %907 = vmatpush.msra.mxu0 %v59
  %908 = vmatpush.msra.mxu0 %v55
  %909 = vmatpush.msra.mxu0 %v51
  %910 = vmatpush.msra.mxu0 %v47
  %911 = vmatpush.msra.mxu0 %v43
  %912 = vmatmul.f32.gmra.mxu0 %v838
  %v913 = vpop.f32.mrf.mxu0
  %v914 = vadd.f32 0.0, %v913
  %915 = vdwg.mxu0
  %916 = vmatpush.msra.mxu0 %v104
  %917 = vmatpush.msra.mxu0 %v100
  %918 = vmatpush.msra.mxu0 %v96
  %919 = vmatpush.msra.mxu0 %v92
  %920 = vmatpush.msra.mxu0 %v88
  %921 = vmatpush.msra.mxu0 %v84
  %922 = vmatpush.msra.mxu0 %v80
  %923 = vmatpush.msra.mxu0 %v76
  %924 = vmatpush.msra.mxu0 %v72
  %925 = vmatpush.msra.mxu0 %v68
  %926 = vmatpush.msra.mxu0 %v64
  %927 = vmatpush.msra.mxu0 %v60
  %928 = vmatpush.msra.mxu0 %v56
  %929 = vmatpush.msra.mxu0 %v52
  %930 = vmatpush.msra.mxu0 %v48
  %931 = vmatpush.msra.mxu0 %v44
  %932 = vmatmul.f32.gmra.mxu0 %v838
  %v933 = vpop.f32.mrf.mxu0
  %v934 = vadd.f32 0.0, %v933
  %935 = vdwg.mxu0
  %936 = vmatpush.msra.mxu0 %v105
  %937 = vmatpush.msra.mxu0 %v101
  %938 = vmatpush.msra.mxu0 %v97
  %939 = vmatpush.msra.mxu0 %v93
  %940 = vmatpush.msra.mxu0 %v89
  %941 = vmatpush.msra.mxu0 %v85
  %942 = vmatpush.msra.mxu0 %v81
  %943 = vmatpush.msra.mxu0 %v77
  %944 = vmatpush.msra.mxu0 %v73
  %945 = vmatpush.msra.mxu0 %v69
  %946 = vmatpush.msra.mxu0 %v65
  %947 = vmatpush.msra.mxu0 %v61
  %948 = vmatpush.msra.mxu0 %v57
  %949 = vmatpush.msra.mxu0 %v53
  %950 = vmatpush.msra.mxu0 %v49
  %951 = vmatpush.msra.mxu0 %v45
  %952 = vmatmul.f32.gmra.mxu0 %v838
  %v953 = vpop.f32.mrf.mxu0
  %v954 = vadd.f32 0.0, %v953
  %955 = vdwg.mxu0
  %v956 = vadd.f32 %v872, %v894
  %v957 = vadd.f32 %v873, %v914
  %v958 = vadd.f32 %v874, %v934
  %v959 = vadd.f32 %v875, %v954
  %v960 = vxor.u32 %v956, 2147483648
  %v961 = vmul.f32 %v960, 1.442695
  %v962 = vpow.pop %v961
  %v963 = vadd.f32 %v962, 1.0
  %v964 = vrcp.pop %v963
  %v965 = vmul.f32 %v963, %v964
  %v966 = vsub.f32 1.0, %v965
  %v967 = vmul.f32 %v964, %v966
  %v968 = vadd.f32 %v964, %v967
  %vm969 = vweird.f32 %v963
  %vm970 = vweird.f32 %v964
  %vm971 = vmor %vm969, %vm970
  %v972 = vsel %vm971, %v964, %v968
  %v973 = vand.u32 2147483647, %v963
  %vm974 = vcmp.eq.f32.partialorder %v973, 8.507059e+37
  %v975 = vand.u32 %v963, 2147483648
  %v976 = vor.u32 1.1754944e-38, %v975
  %v977 = vsel %vm974, %v976, %v972
  %v978 = vmul.f32 1.0, %v977
  %v979 = vxor.u32 %v957, 2147483648
  %v980 = vmul.f32 %v979, 1.442695
  %v981 = vpow.pop %v980
  %v982 = vadd.f32 %v981, 1.0
  %v983 = vrcp.pop %v982
  %v984 = vmul.f32 %v982, %v983
  %v985 = vsub.f32 1.0, %v984
  %v986 = vmul.f32 %v983, %v985
  %v987 = vadd.f32 %v983, %v986
  %vm988 = vweird.f32 %v982
  %vm989 = vweird.f32 %v983
  %vm990 = vmor %vm988, %vm989
  %v991 = vsel %vm990, %v983, %v987
  %v992 = vand.u32 2147483647, %v982
  %vm993 = vcmp.eq.f32.partialorder %v992, 8.507059e+37
  %v994 = vand.u32 %v982, 2147483648
  %v995 = vor.u32 1.1754944e-38, %v994
  %v996 = vsel %vm993, %v995, %v991
  %v997 = vmul.f32 1.0, %v996
  %v998 = vtanh.pop %v958
  %v999 = vxor.u32 %v959, 2147483648
  %v1000 = vmul.f32 %v999, 1.442695
  %v1001 = vpow.pop %v1000
  %v1002 = vadd.f32 %v1001, 1.0
  %v1003 = vrcp.pop %v1002
  %v1004 = vmul.f32 %v1002, %v1003
  %v1005 = vsub.f32 1.0, %v1004
  %v1006 = vmul.f32 %v1003, %v1005
  %v1007 = vadd.f32 %v1003, %v1006
  %vm1008 = vweird.f32 %v1002
  %vm1009 = vweird.f32 %v1003
  %vm1010 = vmor %vm1008, %vm1009
  %v1011 = vsel %vm1010, %v1003, %v1007
  %v1012 = vand.u32 2147483647, %v1002
  %vm1013 = vcmp.eq.f32.partialorder %v1012, 8.507059e+37
  %v1014 = vand.u32 %v1002, 2147483648
  %v1015 = vor.u32 1.1754944e-38, %v1014
  %v1016 = vsel %vm1013, %v1015, %v1011
  %v1017 = vmul.f32 1.0, %v1016
  %v1018 = vmul.f32 %v997, %v870
  %v1019 = vmul.f32 %v978, %v998
  %v1020 = vadd.f32 %v1018, %v1019
  %v1021 = vtanh.pop %v1020
  %v1022 = vmul.f32 %v1017, %v1021
  %s1023 = scalar_lea.vmem %s4, 32
  %1024 = vst [vmem:[%s1023] sm:$0xff] %v1022
  %1025 = vmatpush.msra.mxu0 %v41
  %1026 = vmatpush.msra.mxu0 %v40
  %1027 = vmatpush.msra.mxu0 %v39
  %1028 = vmatpush.msra.mxu0 %v38
  %1029 = vmatpush.msra.mxu0 %v37
  %1030 = vmatpush.msra.mxu0 %v36
  %1031 = vmatpush.msra.mxu0 %v35
  %1032 = vmatpush.msra.mxu0 %v34
  %1033 = vmatpush.msra.mxu0 %v33
  %1034 = vmatpush.msra.mxu0 %v32
  %1035 = vmatpush.msra.mxu0 %v31
  %1036 = vmatpush.msra.mxu0 %v30
  %1037 = vmatpush.msra.mxu0 %v29
  %1038 = vmatpush.msra.mxu0 %v28
  %1039 = vmatpush.msra.mxu0 %v27
  %1040 = vmatpush.msra.mxu0 %v26
  %1041 = vmatmul.f32.gmra.mxu0 %v1020
  %v1042 = vpop.f32.mrf.mxu0
  %v1043 = vadd.f32 0.0, %v1042
  %1044 = vdwg.mxu0
  %v1045 = vtanh.pop %v1043
  %s1046 = scalar_lea.vmem %s1, 40
  %v1047 = vld [vmem:[%s1046] sm:$0xff]
  %1049 = vset.pattern.permute.xlu0 0
  %1050 = vperm.xlu0 %1049, %v1047
  %v1051 = vpop.permute.xlu0 %1050
  %v1053 = vmul.f32 %v1045, %v1051
  %v1054 = vsub.f32 %v1020, %v1053
  %s1055 = scalar_lea.vmem %s0, 160
  %v1056 = vld [vmem:[%s1055] sm:$0xff]
  %v1057 = vld [vmem:[%s1055 + $0x8] sm:$0xff]
  %v1058 = vld [vmem:[%s1055 + $0x10] sm:$0xff]
  %v1059 = vld [vmem:[%s1055 + $0x18] sm:$0xff]
  %1060 = vmatpush.msra.mxu0 %v102
  %1061 = vmatpush.msra.mxu0 %v98
  %1062 = vmatpush.msra.mxu0 %v94
  %1063 = vmatpush.msra.mxu0 %v90
  %1064 = vmatpush.msra.mxu0 %v86
  %1065 = vmatpush.msra.mxu0 %v82
  %1066 = vmatpush.msra.mxu0 %v78
  %1067 = vmatpush.msra.mxu0 %v74
  %1068 = vmatpush.msra.mxu0 %v70
  %1069 = vmatpush.msra.mxu0 %v66
  %1070 = vmatpush.msra.mxu0 %v62
  %1071 = vmatpush.msra.mxu0 %v58
  %1072 = vmatpush.msra.mxu0 %v54
  %1073 = vmatpush.msra.mxu0 %v50
  %1074 = vmatpush.msra.mxu0 %v46
  %1075 = vmatpush.msra.mxu0 %v42
  %1076 = vmatmul.f32.gmra.mxu0 %v1022
  %v1077 = vpop.f32.mrf.mxu0
  %v1078 = vadd.f32 0.0, %v1077
  %1079 = vdwg.mxu0
  %1080 = vmatpush.msra.mxu0 %v103
  %1081 = vmatpush.msra.mxu0 %v99
  %1082 = vmatpush.msra.mxu0 %v95
  %1083 = vmatpush.msra.mxu0 %v91
  %1084 = vmatpush.msra.mxu0 %v87
  %1085 = vmatpush.msra.mxu0 %v83
  %1086 = vmatpush.msra.mxu0 %v79
  %1087 = vmatpush.msra.mxu0 %v75
  %1088 = vmatpush.msra.mxu0 %v71
  %1089 = vmatpush.msra.mxu0 %v67
  %1090 = vmatpush.msra.mxu0 %v63
  %1091 = vmatpush.msra.mxu0 %v59
  %1092 = vmatpush.msra.mxu0 %v55
  %1093 = vmatpush.msra.mxu0 %v51
  %1094 = vmatpush.msra.mxu0 %v47
  %1095 = vmatpush.msra.mxu0 %v43
  %1096 = vmatmul.f32.gmra.mxu0 %v1022
  %v1097 = vpop.f32.mrf.mxu0
  %v1098 = vadd.f32 0.0, %v1097
  %1099 = vdwg.mxu0
  %1100 = vmatpush.msra.mxu0 %v104
  %1101 = vmatpush.msra.mxu0 %v100
  %1102 = vmatpush.msra.mxu0 %v96
  %1103 = vmatpush.msra.mxu0 %v92
  %1104 = vmatpush.msra.mxu0 %v88
  %1105 = vmatpush.msra.mxu0 %v84
  %1106 = vmatpush.msra.mxu0 %v80
  %1107 = vmatpush.msra.mxu0 %v76
  %1108 = vmatpush.msra.mxu0 %v72
  %1109 = vmatpush.msra.mxu0 %v68
  %1110 = vmatpush.msra.mxu0 %v64
  %1111 = vmatpush.msra.mxu0 %v60
  %1112 = vmatpush.msra.mxu0 %v56
  %1113 = vmatpush.msra.mxu0 %v52
  %1114 = vmatpush.msra.mxu0 %v48
  %1115 = vmatpush.msra.mxu0 %v44
  %1116 = vmatmul.f32.gmra.mxu0 %v1022
  %v1117 = vpop.f32.mrf.mxu0
  %v1118 = vadd.f32 0.0, %v1117
  %1119 = vdwg.mxu0
  %1120 = vmatpush.msra.mxu0 %v105
  %1121 = vmatpush.msra.mxu0 %v101
  %1122 = vmatpush.msra.mxu0 %v97
  %1123 = vmatpush.msra.mxu0 %v93
  %1124 = vmatpush.msra.mxu0 %v89
  %1125 = vmatpush.msra.mxu0 %v85
  %1126 = vmatpush.msra.mxu0 %v81
  %1127 = vmatpush.msra.mxu0 %v77
  %1128 = vmatpush.msra.mxu0 %v73
  %1129 = vmatpush.msra.mxu0 %v69
  %1130 = vmatpush.msra.mxu0 %v65
  %1131 = vmatpush.msra.mxu0 %v61
  %1132 = vmatpush.msra.mxu0 %v57
  %1133 = vmatpush.msra.mxu0 %v53
  %1134 = vmatpush.msra.mxu0 %v49
  %1135 = vmatpush.msra.mxu0 %v45
  %1136 = vmatmul.f32.gmra.mxu0 %v1022
  %v1137 = vpop.f32.mrf.mxu0
  %v1138 = vadd.f32 0.0, %v1137
  %1139 = vdwg.mxu0
  %v1140 = vadd.f32 %v1056, %v1078
  %v1141 = vadd.f32 %v1057, %v1098
  %v1142 = vadd.f32 %v1058, %v1118
  %v1143 = vadd.f32 %v1059, %v1138
  %v1144 = vxor.u32 %v1140, 2147483648
  %v1145 = vmul.f32 %v1144, 1.442695
  %v1146 = vpow.pop %v1145
  %v1147 = vadd.f32 %v1146, 1.0
  %v1148 = vrcp.pop %v1147
  %v1149 = vmul.f32 %v1147, %v1148
  %v1150 = vsub.f32 1.0, %v1149
  %v1151 = vmul.f32 %v1148, %v1150
  %v1152 = vadd.f32 %v1148, %v1151
  %vm1153 = vweird.f32 %v1147
  %vm1154 = vweird.f32 %v1148
  %vm1155 = vmor %vm1153, %vm1154
  %v1156 = vsel %vm1155, %v1148, %v1152
  %v1157 = vand.u32 2147483647, %v1147
  %vm1158 = vcmp.eq.f32.partialorder %v1157, 8.507059e+37
  %v1159 = vand.u32 %v1147, 2147483648
  %v1160 = vor.u32 1.1754944e-38, %v1159
  %v1161 = vsel %vm1158, %v1160, %v1156
  %v1162 = vmul.f32 1.0, %v1161
  %v1163 = vxor.u32 %v1141, 2147483648
  %v1164 = vmul.f32 %v1163, 1.442695
  %v1165 = vpow.pop %v1164
  %v1166 = vadd.f32 %v1165, 1.0
  %v1167 = vrcp.pop %v1166
  %v1168 = vmul.f32 %v1166, %v1167
  %v1169 = vsub.f32 1.0, %v1168
  %v1170 = vmul.f32 %v1167, %v1169
  %v1171 = vadd.f32 %v1167, %v1170
  %vm1172 = vweird.f32 %v1166
  %vm1173 = vweird.f32 %v1167
  %vm1174 = vmor %vm1172, %vm1173
  %v1175 = vsel %vm1174, %v1167, %v1171
  %v1176 = vand.u32 2147483647, %v1166
  %vm1177 = vcmp.eq.f32.partialorder %v1176, 8.507059e+37
  %v1178 = vand.u32 %v1166, 2147483648
  %v1179 = vor.u32 1.1754944e-38, %v1178
  %v1180 = vsel %vm1177, %v1179, %v1175
  %v1181 = vmul.f32 1.0, %v1180
  %v1182 = vtanh.pop %v1142
  %v1183 = vxor.u32 %v1143, 2147483648
  %v1184 = vmul.f32 %v1183, 1.442695
  %v1185 = vpow.pop %v1184
  %v1186 = vadd.f32 %v1185, 1.0
  %v1187 = vrcp.pop %v1186
  %v1188 = vmul.f32 %v1186, %v1187
  %v1189 = vsub.f32 1.0, %v1188
  %v1190 = vmul.f32 %v1187, %v1189
  %v1191 = vadd.f32 %v1187, %v1190
  %vm1192 = vweird.f32 %v1186
  %vm1193 = vweird.f32 %v1187
  %vm1194 = vmor %vm1192, %vm1193
  %v1195 = vsel %vm1194, %v1187, %v1191
  %v1196 = vand.u32 2147483647, %v1186
  %vm1197 = vcmp.eq.f32.partialorder %v1196, 8.507059e+37
  %v1198 = vand.u32 %v1186, 2147483648
  %v1199 = vor.u32 1.1754944e-38, %v1198
  %v1200 = vsel %vm1197, %v1199, %v1195
  %v1201 = vmul.f32 1.0, %v1200
  %v1202 = vmul.f32 %v1181, %v1054
  %v1203 = vmul.f32 %v1162, %v1182
  %v1204 = vadd.f32 %v1202, %v1203
  %v1205 = vtanh.pop %v1204
  %v1206 = vmul.f32 %v1201, %v1205
  %s1207 = scalar_lea.vmem %s4, 40
  %1208 = vst [vmem:[%s1207] sm:$0xff] %v1206
  %1209 = vmatpush.msra.mxu0 %v41
  %1210 = vmatpush.msra.mxu0 %v40
  %1211 = vmatpush.msra.mxu0 %v39
  %1212 = vmatpush.msra.mxu0 %v38
  %1213 = vmatpush.msra.mxu0 %v37
  %1214 = vmatpush.msra.mxu0 %v36
  %1215 = vmatpush.msra.mxu0 %v35
  %1216 = vmatpush.msra.mxu0 %v34
  %1217 = vmatpush.msra.mxu0 %v33
  %1218 = vmatpush.msra.mxu0 %v32
  %1219 = vmatpush.msra.mxu0 %v31
  %1220 = vmatpush.msra.mxu0 %v30
  %1221 = vmatpush.msra.mxu0 %v29
  %1222 = vmatpush.msra.mxu0 %v28
  %1223 = vmatpush.msra.mxu0 %v27
  %1224 = vmatpush.msra.mxu0 %v26
  %1225 = vmatmul.f32.gmra.mxu0 %v1204
  %v1226 = vpop.f32.mrf.mxu0
  %v1227 = vadd.f32 0.0, %v1226
  %1228 = vdwg.mxu0
  %v1229 = vtanh.pop %v1227
  %s1230 = scalar_lea.vmem %s1, 48
  %v1231 = vld [vmem:[%s1230] sm:$0xff]
  %1233 = vset.pattern.permute.xlu0 0
  %1234 = vperm.xlu0 %1233, %v1231
  %v1235 = vpop.permute.xlu0 %1234
  %v1237 = vmul.f32 %v1229, %v1235
  %v1238 = vsub.f32 %v1204, %v1237
  %s1239 = scalar_lea.vmem %s0, 192
  %v1240 = vld [vmem:[%s1239] sm:$0xff]
  %v1241 = vld [vmem:[%s1239 + $0x8] sm:$0xff]
  %v1242 = vld [vmem:[%s1239 + $0x10] sm:$0xff]
  %v1243 = vld [vmem:[%s1239 + $0x18] sm:$0xff]
  %1244 = vmatpush.msra.mxu0 %v102
  %1245 = vmatpush.msra.mxu0 %v98
  %1246 = vmatpush.msra.mxu0 %v94
  %1247 = vmatpush.msra.mxu0 %v90
  %1248 = vmatpush.msra.mxu0 %v86
  %1249 = vmatpush.msra.mxu0 %v82
  %1250 = vmatpush.msra.mxu0 %v78
  %1251 = vmatpush.msra.mxu0 %v74
  %1252 = vmatpush.msra.mxu0 %v70
  %1253 = vmatpush.msra.mxu0 %v66
  %1254 = vmatpush.msra.mxu0 %v62
  %1255 = vmatpush.msra.mxu0 %v58
  %1256 = vmatpush.msra.mxu0 %v54
  %1257 = vmatpush.msra.mxu0 %v50
  %1258 = vmatpush.msra.mxu0 %v46
  %1259 = vmatpush.msra.mxu0 %v42
  %1260 = vmatmul.f32.gmra.mxu0 %v1206
  %v1261 = vpop.f32.mrf.mxu0
  %v1262 = vadd.f32 0.0, %v1261
  %1263 = vdwg.mxu0
  %1264 = vmatpush.msra.mxu0 %v103
  %1265 = vmatpush.msra.mxu0 %v99
  %1266 = vmatpush.msra.mxu0 %v95
  %1267 = vmatpush.msra.mxu0 %v91
  %1268 = vmatpush.msra.mxu0 %v87
  %1269 = vmatpush.msra.mxu0 %v83
  %1270 = vmatpush.msra.mxu0 %v79
  %1271 = vmatpush.msra.mxu0 %v75
  %1272 = vmatpush.msra.mxu0 %v71
  %1273 = vmatpush.msra.mxu0 %v67
  %1274 = vmatpush.msra.mxu0 %v63
  %1275 = vmatpush.msra.mxu0 %v59
  %1276 = vmatpush.msra.mxu0 %v55
  %1277 = vmatpush.msra.mxu0 %v51
  %1278 = vmatpush.msra.mxu0 %v47
  %1279 = vmatpush.msra.mxu0 %v43
  %1280 = vmatmul.f32.gmra.mxu0 %v1206
  %v1281 = vpop.f32.mrf.mxu0
  %v1282 = vadd.f32 0.0, %v1281
  %1283 = vdwg.mxu0
  %1284 = vmatpush.msra.mxu0 %v104
  %1285 = vmatpush.msra.mxu0 %v100
  %1286 = vmatpush.msra.mxu0 %v96
  %1287 = vmatpush.msra.mxu0 %v92
  %1288 = vmatpush.msra.mxu0 %v88
  %1289 = vmatpush.msra.mxu0 %v84
  %1290 = vmatpush.msra.mxu0 %v80
  %1291 = vmatpush.msra.mxu0 %v76
  %1292 = vmatpush.msra.mxu0 %v72
  %1293 = vmatpush.msra.mxu0 %v68
  %1294 = vmatpush.msra.mxu0 %v64
  %1295 = vmatpush.msra.mxu0 %v60
  %1296 = vmatpush.msra.mxu0 %v56
  %1297 = vmatpush.msra.mxu0 %v52
  %1298 = vmatpush.msra.mxu0 %v48
  %1299 = vmatpush.msra.mxu0 %v44
  %1300 = vmatmul.f32.gmra.mxu0 %v1206
  %v1301 = vpop.f32.mrf.mxu0
  %v1302 = vadd.f32 0.0, %v1301
  %1303 = vdwg.mxu0
  %1304 = vmatpush.msra.mxu0 %v105
  %1305 = vmatpush.msra.mxu0 %v101
  %1306 = vmatpush.msra.mxu0 %v97
  %1307 = vmatpush.msra.mxu0 %v93
  %1308 = vmatpush.msra.mxu0 %v89
  %1309 = vmatpush.msra.mxu0 %v85
  %1310 = vmatpush.msra.mxu0 %v81
  %1311 = vmatpush.msra.mxu0 %v77
  %1312 = vmatpush.msra.mxu0 %v73
  %1313 = vmatpush.msra.mxu0 %v69
  %1314 = vmatpush.msra.mxu0 %v65
  %1315 = vmatpush.msra.mxu0 %v61
  %1316 = vmatpush.msra.mxu0 %v57
  %1317 = vmatpush.msra.mxu0 %v53
  %1318 = vmatpush.msra.mxu0 %v49
  %1319 = vmatpush.msra.mxu0 %v45
  %1320 = vmatmul.f32.gmra.mxu0 %v1206
  %v1321 = vpop.f32.mrf.mxu0
  %v1322 = vadd.f32 0.0, %v1321
  %1323 = vdwg.mxu0
  %v1324 = vadd.f32 %v1240, %v1262
  %v1325 = vadd.f32 %v1241, %v1282
  %v1326 = vadd.f32 %v1242, %v1302
  %v1327 = vadd.f32 %v1243, %v1322
  %v1328 = vxor.u32 %v1324, 2147483648
  %v1329 = vmul.f32 %v1328, 1.442695
  %v1330 = vpow.pop %v1329
  %v1331 = vadd.f32 %v1330, 1.0
  %v1332 = vrcp.pop %v1331
  %v1333 = vmul.f32 %v1331, %v1332
  %v1334 = vsub.f32 1.0, %v1333
  %v1335 = vmul.f32 %v1332, %v1334
  %v1336 = vadd.f32 %v1332, %v1335
  %vm1337 = vweird.f32 %v1331
  %vm1338 = vweird.f32 %v1332
  %vm1339 = vmor %vm1337, %vm1338
  %v1340 = vsel %vm1339, %v1332, %v1336
  %v1341 = vand.u32 2147483647, %v1331
  %vm1342 = vcmp.eq.f32.partialorder %v1341, 8.507059e+37
  %v1343 = vand.u32 %v1331, 2147483648
  %v1344 = vor.u32 1.1754944e-38, %v1343
  %v1345 = vsel %vm1342, %v1344, %v1340
  %v1346 = vmul.f32 1.0, %v1345
  %v1347 = vxor.u32 %v1325, 2147483648
  %v1348 = vmul.f32 %v1347, 1.442695
  %v1349 = vpow.pop %v1348
  %v1350 = vadd.f32 %v1349, 1.0
  %v1351 = vrcp.pop %v1350
  %v1352 = vmul.f32 %v1350, %v1351
  %v1353 = vsub.f32 1.0, %v1352
  %v1354 = vmul.f32 %v1351, %v1353
  %v1355 = vadd.f32 %v1351, %v1354
  %vm1356 = vweird.f32 %v1350
  %vm1357 = vweird.f32 %v1351
  %vm1358 = vmor %vm1356, %vm1357
  %v1359 = vsel %vm1358, %v1351, %v1355
  %v1360 = vand.u32 2147483647, %v1350
  %vm1361 = vcmp.eq.f32.partialorder %v1360, 8.507059e+37
  %v1362 = vand.u32 %v1350, 2147483648
  %v1363 = vor.u32 1.1754944e-38, %v1362
  %v1364 = vsel %vm1361, %v1363, %v1359
  %v1365 = vmul.f32 1.0, %v1364
  %v1366 = vtanh.pop %v1326
  %v1367 = vxor.u32 %v1327, 2147483648
  %v1368 = vmul.f32 %v1367, 1.442695
  %v1369 = vpow.pop %v1368
  %v1370 = vadd.f32 %v1369, 1.0
  %v1371 = vrcp.pop %v1370
  %v1372 = vmul.f32 %v1370, %v1371
  %v1373 = vsub.f32 1.0, %v1372
  %v1374 = vmul.f32 %v1371, %v1373
  %v1375 = vadd.f32 %v1371, %v1374
  %vm1376 = vweird.f32 %v1370
  %vm1377 = vweird.f32 %v1371
  %vm1378 = vmor %vm1376, %vm1377
  %v1379 = vsel %vm1378, %v1371, %v1375
  %v1380 = vand.u32 2147483647, %v1370
  %vm1381 = vcmp.eq.f32.partialorder %v1380, 8.507059e+37
  %v1382 = vand.u32 %v1370, 2147483648
  %v1383 = vor.u32 1.1754944e-38, %v1382
  %v1384 = vsel %vm1381, %v1383, %v1379
  %v1385 = vmul.f32 1.0, %v1384
  %v1386 = vmul.f32 %v1365, %v1238
  %v1387 = vmul.f32 %v1346, %v1366
  %v1388 = vadd.f32 %v1386, %v1387
  %v1389 = vtanh.pop %v1388
  %v1390 = vmul.f32 %v1385, %v1389
  %s1391 = scalar_lea.vmem %s4, 48
  %1392 = vst [vmem:[%s1391] sm:$0xff] %v1390
  %1393 = vmatpush.msra.mxu0 %v41
  %1394 = vmatpush.msra.mxu0 %v40
  %1395 = vmatpush.msra.mxu0 %v39
  %1396 = vmatpush.msra.mxu0 %v38
  %1397 = vmatpush.msra.mxu0 %v37
  %1398 = vmatpush.msra.mxu0 %v36
  %1399 = vmatpush.msra.mxu0 %v35
  %1400 = vmatpush.msra.mxu0 %v34
  %1401 = vmatpush.msra.mxu0 %v33
  %1402 = vmatpush.msra.mxu0 %v32
  %1403 = vmatpush.msra.mxu0 %v31
  %1404 = vmatpush.msra.mxu0 %v30
  %1405 = vmatpush.msra.mxu0 %v29
  %1406 = vmatpush.msra.mxu0 %v28
  %1407 = vmatpush.msra.mxu0 %v27
  %1408 = vmatpush.msra.mxu0 %v26
  %1409 = vmatmul.f32.gmra.mxu0 %v1388
  %v1410 = vpop.f32.mrf.mxu0
  %v1411 = vadd.f32 0.0, %v1410
  %1412 = vdwg.mxu0
  %v1413 = vtanh.pop %v1411
  %s1414 = scalar_lea.vmem %s1, 56
  %v1415 = vld [vmem:[%s1414] sm:$0xff]
  %1417 = vset.pattern.permute.xlu0 0
  %1418 = vperm.xlu0 %1417, %v1415
  %v1419 = vpop.permute.xlu0 %1418
  %v1421 = vmul.f32 %v1413, %v1419
  %v1422 = vsub.f32 %v1388, %v1421
  %s1423 = scalar_lea.vmem %s0, 224
  %v1424 = vld [vmem:[%s1423] sm:$0xff]
  %v1425 = vld [vmem:[%s1423 + $0x8] sm:$0xff]
  %v1426 = vld [vmem:[%s1423 + $0x10] sm:$0xff]
  %v1427 = vld [vmem:[%s1423 + $0x18] sm:$0xff]
  %1428 = vmatpush.msra.mxu0 %v102
  %1429 = vmatpush.msra.mxu0 %v98
  %1430 = vmatpush.msra.mxu0 %v94
  %1431 = vmatpush.msra.mxu0 %v90
  %1432 = vmatpush.msra.mxu0 %v86
  %1433 = vmatpush.msra.mxu0 %v82
  %1434 = vmatpush.msra.mxu0 %v78
  %1435 = vmatpush.msra.mxu0 %v74
  %1436 = vmatpush.msra.mxu0 %v70
  %1437 = vmatpush.msra.mxu0 %v66
  %1438 = vmatpush.msra.mxu0 %v62
  %1439 = vmatpush.msra.mxu0 %v58
  %1440 = vmatpush.msra.mxu0 %v54
  %1441 = vmatpush.msra.mxu0 %v50
  %1442 = vmatpush.msra.mxu0 %v46
  %1443 = vmatpush.msra.mxu0 %v42
  %1444 = vmatmul.f32.gmra.mxu0 %v1390
  %v1445 = vpop.f32.mrf.mxu0
  %v1446 = vadd.f32 0.0, %v1445
  %1447 = vdwg.mxu0
  %1448 = vmatpush.msra.mxu0 %v103
  %1449 = vmatpush.msra.mxu0 %v99
  %1450 = vmatpush.msra.mxu0 %v95
  %1451 = vmatpush.msra.mxu0 %v91
  %1452 = vmatpush.msra.mxu0 %v87
  %1453 = vmatpush.msra.mxu0 %v83
  %1454 = vmatpush.msra.mxu0 %v79
  %1455 = vmatpush.msra.mxu0 %v75
  %1456 = vmatpush.msra.mxu0 %v71
  %1457 = vmatpush.msra.mxu0 %v67
  %1458 = vmatpush.msra.mxu0 %v63
  %1459 = vmatpush.msra.mxu0 %v59
  %1460 = vmatpush.msra.mxu0 %v55
  %1461 = vmatpush.msra.mxu0 %v51
  %1462 = vmatpush.msra.mxu0 %v47
  %1463 = vmatpush.msra.mxu0 %v43
  %1464 = vmatmul.f32.gmra.mxu0 %v1390
  %v1465 = vpop.f32.mrf.mxu0
  %v1466 = vadd.f32 0.0, %v1465
  %1467 = vdwg.mxu0
  %1468 = vmatpush.msra.mxu0 %v104
  %1469 = vmatpush.msra.mxu0 %v100
  %1470 = vmatpush.msra.mxu0 %v96
  %1471 = vmatpush.msra.mxu0 %v92
  %1472 = vmatpush.msra.mxu0 %v88
  %1473 = vmatpush.msra.mxu0 %v84
  %1474 = vmatpush.msra.mxu0 %v80
  %1475 = vmatpush.msra.mxu0 %v76
  %1476 = vmatpush.msra.mxu0 %v72
  %1477 = vmatpush.msra.mxu0 %v68
  %1478 = vmatpush.msra.mxu0 %v64
  %1479 = vmatpush.msra.mxu0 %v60
  %1480 = vmatpush.msra.mxu0 %v56
  %1481 = vmatpush.msra.mxu0 %v52
  %1482 = vmatpush.msra.mxu0 %v48
  %1483 = vmatpush.msra.mxu0 %v44
  %1484 = vmatmul.f32.gmra.mxu0 %v1390
  %v1485 = vpop.f32.mrf.mxu0
  %v1486 = vadd.f32 0.0, %v1485
  %1487 = vdwg.mxu0
  %1488 = vmatpush.msra.mxu0 %v105
  %1489 = vmatpush.msra.mxu0 %v101
  %1490 = vmatpush.msra.mxu0 %v97
  %1491 = vmatpush.msra.mxu0 %v93
  %1492 = vmatpush.msra.mxu0 %v89
  %1493 = vmatpush.msra.mxu0 %v85
  %1494 = vmatpush.msra.mxu0 %v81
  %1495 = vmatpush.msra.mxu0 %v77
  %1496 = vmatpush.msra.mxu0 %v73
  %1497 = vmatpush.msra.mxu0 %v69
  %1498 = vmatpush.msra.mxu0 %v65
  %1499 = vmatpush.msra.mxu0 %v61
  %1500 = vmatpush.msra.mxu0 %v57
  %1501 = vmatpush.msra.mxu0 %v53
  %1502 = vmatpush.msra.mxu0 %v49
  %1503 = vmatpush.msra.mxu0 %v45
  %1504 = vmatmul.f32.gmra.mxu0 %v1390
  %v1505 = vpop.f32.mrf.mxu0
  %v1506 = vadd.f32 0.0, %v1505
  %1507 = vdwg.mxu0
  %v1508 = vadd.f32 %v1424, %v1446
  %v1509 = vadd.f32 %v1425, %v1466
  %v1510 = vadd.f32 %v1426, %v1486
  %v1511 = vadd.f32 %v1427, %v1506
  %v1512 = vxor.u32 %v1508, 2147483648
  %v1513 = vmul.f32 %v1512, 1.442695
  %v1514 = vpow.pop %v1513
  %v1515 = vadd.f32 %v1514, 1.0
  %v1516 = vrcp.pop %v1515
  %v1517 = vmul.f32 %v1515, %v1516
  %v1518 = vsub.f32 1.0, %v1517
  %v1519 = vmul.f32 %v1516, %v1518
  %v1520 = vadd.f32 %v1516, %v1519
  %vm1521 = vweird.f32 %v1515
  %vm1522 = vweird.f32 %v1516
  %vm1523 = vmor %vm1521, %vm1522
  %v1524 = vsel %vm1523, %v1516, %v1520
  %v1525 = vand.u32 2147483647, %v1515
  %vm1526 = vcmp.eq.f32.partialorder %v1525, 8.507059e+37
  %v1527 = vand.u32 %v1515, 2147483648
  %v1528 = vor.u32 1.1754944e-38, %v1527
  %v1529 = vsel %vm1526, %v1528, %v1524
  %v1530 = vmul.f32 1.0, %v1529
  %v1531 = vxor.u32 %v1509, 2147483648
  %v1532 = vmul.f32 %v1531, 1.442695
  %v1533 = vpow.pop %v1532
  %v1534 = vadd.f32 %v1533, 1.0
  %v1535 = vrcp.pop %v1534
  %v1536 = vmul.f32 %v1534, %v1535
  %v1537 = vsub.f32 1.0, %v1536
  %v1538 = vmul.f32 %v1535, %v1537
  %v1539 = vadd.f32 %v1535, %v1538
  %vm1540 = vweird.f32 %v1534
  %vm1541 = vweird.f32 %v1535
  %vm1542 = vmor %vm1540, %vm1541
  %v1543 = vsel %vm1542, %v1535, %v1539
  %v1544 = vand.u32 2147483647, %v1534
  %vm1545 = vcmp.eq.f32.partialorder %v1544, 8.507059e+37
  %v1546 = vand.u32 %v1534, 2147483648
  %v1547 = vor.u32 1.1754944e-38, %v1546
  %v1548 = vsel %vm1545, %v1547, %v1543
  %v1549 = vmul.f32 1.0, %v1548
  %v1550 = vtanh.pop %v1510
  %v1551 = vxor.u32 %v1511, 2147483648
  %v1552 = vmul.f32 %v1551, 1.442695
  %v1553 = vpow.pop %v1552
  %v1554 = vadd.f32 %v1553, 1.0
  %v1555 = vrcp.pop %v1554
  %v1556 = vmul.f32 %v1554, %v1555
  %v1557 = vsub.f32 1.0, %v1556
  %v1558 = vmul.f32 %v1555, %v1557
  %v1559 = vadd.f32 %v1555, %v1558
  %vm1560 = vweird.f32 %v1554
  %vm1561 = vweird.f32 %v1555
  %vm1562 = vmor %vm1560, %vm1561
  %v1563 = vsel %vm1562, %v1555, %v1559
  %v1564 = vand.u32 2147483647, %v1554
  %vm1565 = vcmp.eq.f32.partialorder %v1564, 8.507059e+37
  %v1566 = vand.u32 %v1554, 2147483648
  %v1567 = vor.u32 1.1754944e-38, %v1566
  %v1568 = vsel %vm1565, %v1567, %v1563
  %v1569 = vmul.f32 1.0, %v1568
  %v1570 = vmul.f32 %v1549, %v1422
  %v1571 = vmul.f32 %v1530, %v1550
  %v1572 = vadd.f32 %v1570, %v1571
  %v1573 = vtanh.pop %v1572
  %v1574 = vmul.f32 %v1569, %v1573
  %s1575 = scalar_lea.vmem %s4, 56
  %1576 = vst [vmem:[%s1575] sm:$0xff] %v1574
  %1577 = vst [vmem:[#allocation2] sm:$0xff] %v1574
  %1578 = vst [vmem:[#allocation3] sm:$0xff] %v1572
  // Predicated region
  $region22: #{tlstm_forward.1} parent=0 // pred_check
    %p1579 = pneg %p20
  $region23: #{tlstm_forward.1} parent=0 // pred_check_branch
    %1581 = sbr.rel (%p1579) target = $region25
  $region24: #{tlstm_forward.1} parent=0 // pred_region
    %1582 = vst [vmem:[%s5] sm:$0xff] %v1574
    %1583 = vst [vmem:[%s6] sm:$0xff] %v1572
  $region25: #{tlstm_forward.1} parent=0 // pred_fallthru
    _
  // Predicated region
  $region26: #{tlstm_forward.1} parent=0 // pred_check
    _
  $region27: #{tlstm_forward.1} parent=0 // pred_check_branch
    %1585 = sbr.rel (0) target = $region29
  $region28: #{tlstm_forward.1} parent=0 // pred_region
    _
  $region29: #{tlstm_forward.1} parent=0 // pred_fallthru
    _
  // Predicated region
  $region30: #{tlstm_forward.1} parent=0 // pred_check
    _
  $region31: #{tlstm_forward.1} parent=0 // pred_check_branch
    %1587 = sbr.rel (0) target = $region33
  $region32: #{tlstm_forward.1} parent=0 // pred_region
    _
  $region33: #{tlstm_forward.1} parent=0 // pred_fallthru
    _
  // Predicated region
  $region34: #{tlstm_forward.1} parent=0 // pred_check
    _
  $region35: #{tlstm_forward.1} parent=0 // pred_check_branch
    %1589 = sbr.rel (0) target = $region37
  $region36: #{tlstm_forward.1} parent=0 // pred_region
    _
  $region37: #{tlstm_forward.1} parent=0 // pred_fallthru
    _
  // Predicated region
  $region38: #{tlstm_forward.1} parent=0 // pred_check
    _
  $region39: #{tlstm_forward.1} parent=0 // pred_check_branch
    %1591 = sbr.rel (0) target = $region41
  $region40: #{tlstm_forward.1} parent=0 // pred_region
    _
  $region41: #{tlstm_forward.1} parent=0 // pred_fallthru
    _
  // Predicated region
  $region42: #{tlstm_forward.1} parent=0 // pred_check
    _
  $region43: #{tlstm_forward.1} parent=0 // pred_check_branch
    %1593 = sbr.rel (0) target = $region45
  $region44: #{tlstm_forward.1} parent=0 // pred_region
    _
  $region45: #{tlstm_forward.1} parent=0 // pred_fallthru
    _
  // Predicated region
  $region46: #{tlstm_forward.1} parent=0 // pred_check
    _
  $region47: #{tlstm_forward.1} parent=0 // pred_check_branch
    %1595 = sbr.rel (0) target = $region49
  $region48: #{tlstm_forward.1} parent=0 // pred_region
    _
  $region49: #{tlstm_forward.1} parent=0 // pred_fallthru
    _

</llo_original>
